<compile_context>
chip_gen: v7x
topology: tpu7x:2x2x1
jax: 0.10.0
libtpu: 0.0.40
codegen_flags: <defaults>
</compile_context>

<pallas_src>
import functools

import jax
import jax.numpy as jnp
from jax.experimental import pallas as pl
from jax.experimental.pallas import tpu as pltpu


def _detection_kernel(stride, channels_last,
                      anchors_ref, cxy_ref, pred_ref, out_ref, dec_ref):
    """Decode one batch image (all anchors).

    anchors_ref : SMEM (A, 2) f32     raw anchor (w, h) in image pixels
    cxy_ref     : VMEM (2, GG) f32    grid-cell offsets [cx; cy], row-major flat
    pred_ref    : VMEM (1, A, C5, GG) raw network outputs for this image
    out_ref     : VMEM (1, A, GG, C5) if channels_last else (1, A, C5, GG)
    dec_ref     : VMEM (C5p, GG) f32  scratch, C5p = C5 rounded up to 8
    """
    A = pred_ref.shape[1]
    C5 = pred_ref.shape[2]
    C5p, GG = dec_ref.shape

    cxy = cxy_ref[...]                                     # (2, GG), reused for all anchors
    if C5p > C5:                                           # keep pad rows defined
        dec_ref[C5:, :] = jnp.zeros((C5p - C5, GG), jnp.float32)

    for a in range(A):                                     # A is small & static -> unrolled
        p = pred_ref[0, a].astype(jnp.float32)             # (C5, GG)

        # x, y : sigmoid + grid offset, scaled to image pixels.
        dec_ref[0:2, :] = (jax.nn.sigmoid(p[0:2, :]) + cxy) * stride

        # w, h : exp only on these two rows; anchor w/h already in pixels
        # (== scaled_anchor * stride), so no extra stride multiply.
        wh = jnp.exp(p[2:4, :])
        dec_ref[2:3, :] = wh[0:1, :] * anchors_ref[a, 0]
        dec_ref[3:4, :] = wh[1:2, :] * anchors_ref[a, 1]

        # objectness + class scores: plain sigmoid.
        dec_ref[4:C5, :] = jax.nn.sigmoid(p[4:C5, :])

        if channels_last:
            # (C5p, GG) -> (GG, C5p) in VMEM, drop the pad rows, store channel-last
            # so the final (B, A*GG, C5) view is a free reshape (no XLA transpose).
            out_ref[0, a] = dec_ref[...].T[:, :C5]
        else:
            out_ref[0, a] = dec_ref[0:C5, :]


def _decode_pallas(pred, anchors, cxy, stride, channels_last):
    B, A, C5, GG = pred.shape
    C5p = ((C5 + 7) // 8) * 8

    if channels_last:
        out_shape = jax.ShapeDtypeStruct((B, A, GG, C5), jnp.float32)
        out_spec = pl.BlockSpec((1, A, GG, C5), lambda b: (b, 0, 0, 0))
    else:
        out_shape = jax.ShapeDtypeStruct((B, A, C5, GG), jnp.float32)
        out_spec = pl.BlockSpec((1, A, C5, GG), lambda b: (b, 0, 0, 0))

    kernel = functools.partial(_detection_kernel, stride, channels_last)

    return pl.pallas_call(
        kernel,
        out_shape=out_shape,
        grid_spec=pltpu.PrefetchScalarGridSpec(
            num_scalar_prefetch=0,
            grid=(B,),                                        # one big block per image
            in_specs=[
                pl.BlockSpec(memory_space=pltpu.MemorySpace.SMEM),        # anchors (A, 2)
                pl.BlockSpec((2, GG), lambda b: (0, 0)),                  # cx/cy offsets
                pl.BlockSpec((1, A, C5, GG), lambda b: (b, 0, 0, 0)),     # raw preds
            ],
            out_specs=out_spec,
            scratch_shapes=[pltpu.VMEM((C5p, GG), jnp.float32)],
        ),
        compiler_params=pltpu.CompilerParams(
            dimension_semantics=("parallel",)),               # v7x: both TCs busy
    )(anchors, cxy, pred)


def detection_forward(x, anchors, image_size, num_classes):
    """Pallas implementation of Detection.forward(x, targets=None).

    x       : (B, A*(num_classes+5), G, G)   (NCHW, like PyTorch)
    anchors : (A, 2) anchor (w, h) in image pixels
    returns : (B, A*G*G, num_classes+5) float32
    """
    B = x.shape[0]
    G = x.shape[2]
    A = anchors.shape[0]
    C5 = num_classes + 5
    GG = G * G
    stride = float(image_size) / float(G)

    # free reshape from NCHW; keep the input dtype (bf16 passes through).
    pred = x.reshape(B, A, C5, GG)

    # grid offsets, flattened row-major: cx[i*G+j] = j, cy[i*G+j] = i
    gx = jnp.tile(jnp.arange(G, dtype=jnp.float32), G)
    gy = jnp.repeat(jnp.arange(G, dtype=jnp.float32), G)
    cxy = jnp.stack([gx, gy], axis=0)                      # (2, GG)

    anchors_f32 = jnp.asarray(anchors, jnp.float32)        # raw pixel anchors

    try:
        # Preferred path: channel-last permute done inside the kernel;
        # the reshape below is a free (contiguous) view.
        out = _decode_pallas(pred, anchors_f32, cxy, stride, channels_last=True)
        out = jax.block_until_ready(out)
        return out.reshape(B, A * GG, C5)
    except Exception:
        # TODO(synk): remove this fallback once the in-kernel channel-last
        # transpose is confirmed on all Mosaic versions.  Fallback keeps the
        # channel-major kernel output and lets XLA do the final permute.
        out = _decode_pallas(pred, anchors_f32, cxy, stride, channels_last=False)
        out = out.reshape(B, A, C5, G, G).transpose(0, 1, 3, 4, 2)
        return out.reshape(B, A * GG, C5)


def detection_reference(x, anchors, image_size, num_classes):
    """Pure-JAX replica of the PyTorch forward (targets=None path)."""
    B = x.shape[0]
    G = x.shape[2]
    A = anchors.shape[0]
    stride = float(image_size) / float(G)
    pred = x.reshape(B, A, num_classes + 5, G, G).transpose(0, 1, 3, 4, 2)
    tx = jax.nn.sigmoid(pred[..., 0])
    ty = jax.nn.sigmoid(pred[..., 1])
    tw = pred[..., 2]
    th = pred[..., 3]
    conf = jax.nn.sigmoid(pred[..., 4])
    cls = jax.nn.sigmoid(pred[..., 5:])
    a_m, b_m = jnp.meshgrid(jnp.arange(G), jnp.arange(G))   # 'xy', same as np
    cx = a_m.reshape(1, 1, G, G).astype(jnp.float32)
    cy = b_m.reshape(1, 1, G, G).astype(jnp.float32)
    scaled = anchors / stride
    aw = scaled[:, 0].reshape(1, A, 1, 1)
    ah = scaled[:, 1].reshape(1, A, 1, 1)
    bx = tx + cx
    by = ty + cy
    bw = jnp.exp(tw) * aw
    bh = jnp.exp(th) * ah
    boxes = jnp.stack([bx, by, bw, bh], axis=-1).reshape(B, -1, 4) * stride
    return jnp.concatenate(
        [boxes, conf.reshape(B, -1, 1), cls.reshape(B, -1, num_classes)], axis=-1)


if __name__ == "__main__":
    # Small shapes consistent with the module:
    #   3 anchors, 2 classes -> C5 = 7 channels per anchor, grid 16x16.
    num_classes = 2
    anchors = jnp.array([(10.0, 13.0), (16.0, 30.0), (33.0, 23.0)],
                        dtype=jnp.float32)
    A = anchors.shape[0]
    image_size = 64
    B, G = 2, 16
    C5 = num_classes + 5

    key = jax.random.PRNGKey(0)
    x = jax.random.normal(key, (B, A * C5, G, G), dtype=jnp.float32)

    out = detection_forward(x, anchors, image_size, num_classes)
    out = jax.block_until_ready(out)

    ref = detection_reference(x, anchors, image_size, num_classes)
    assert out.shape == (B, A * G * G, C5), out.shape
    assert jnp.allclose(out, ref, atol=1e-5, rtol=1e-5), "mismatch vs reference"

    print("KERNEL_OK")
</pallas_src>

<mosaic_0001>
module attributes {stable_mosaic.version = 11 : i64} {
  func.func @_detection_kernel(%arg0: i32, %arg1: memref<3x2xf32, #tpu.memory_space<smem>>, %arg2: memref<2x256xf32, #tpu.memory_space<vmem>>, %arg3: memref<1x3x7x256xf32, #tpu.memory_space<vmem>>, %arg4: memref<1x3x256x7xf32, #tpu.memory_space<vmem>>, %arg5: memref<8x256xf32, #tpu.memory_space<vmem>>) attributes {dimension_semantics = [#tpu.dimension_semantics<parallel>], iteration_bounds = array<i64: 2>, scalar_prefetch = 0 : i64, scratch_operands = 1 : i64, tpu.core_type = #tpu.core_type<tc>, window_params = [{transform_indices = @transform_0, window_bounds = array<i64: 3, 2>}, {pipeline_mode = #tpu.pipeline_mode<synchronous>, transform_indices = @transform_1, window_bounds = array<i64: 2, 256>}, {transform_indices = @transform_2, window_bounds = array<i64: 1, 3, 7, 256>}, {transform_indices = @transform_3, window_bounds = array<i64: 1, 3, 256, 7>}]} {
    %c0 = arith.constant 0 : index
    %c0_0 = arith.constant 0 : index
    %0 = vector.load %arg2[%c0, %c0_0] : memref<2x256xf32, #tpu.memory_space<vmem>>, vector<2x256xf32>
    %cst = arith.constant 0.000000e+00 : f32
    %1 = vector.broadcast %cst : f32 to vector<1x256xf32>
    %c7 = arith.constant 7 : index
    %c0_1 = arith.constant 0 : index
    %2 = vector.load %arg5[%c7, %c0_1] : memref<8x256xf32, #tpu.memory_space<vmem>>, vector<1x256xf32>
    tpu.vector_store %arg5[%c7, %c0_1], %1 {strides = array<i32>} : memref<8x256xf32, #tpu.memory_space<vmem>>, vector<1x256xf32>,
    %c0_2 = arith.constant 0 : index
    %c0_3 = arith.constant 0 : index
    %c0_4 = arith.constant 0 : index
    %c0_5 = arith.constant 0 : index
    %3 = vector.load %arg3[%c0_2, %c0_3, %c0_4, %c0_5] : memref<1x3x7x256xf32, #tpu.memory_space<vmem>>, vector<1x1x7x256xf32>
    %4 = vector.shape_cast %3 : vector<1x1x7x256xf32> to vector<7x256xf32>
    %5 = vector.extract_strided_slice %4 {offsets = [0, 0], sizes = [2, 256], strides = [1, 1]} : vector<7x256xf32> to vector<2x256xf32>
    %6 = arith.negf %5 : vector<2x256xf32>
    %7 = math.exp %6 : vector<2x256xf32>
    %cst_6 = arith.constant 1.000000e+00 : f32
    %8 = vector.broadcast %cst_6 : f32 to vector<2x256xf32>
    %9 = arith.addf %8, %7 : vector<2x256xf32>
    %10 = arith.divf %8, %9 : vector<2x256xf32>
    %11 = arith.addf %10, %0 : vector<2x256xf32>
    %cst_7 = arith.constant 4.000000e+00 : f32
    %12 = vector.broadcast %cst_7 : f32 to vector<2x256xf32>
    %13 = arith.mulf %11, %12 : vector<2x256xf32>
    %c0_8 = arith.constant 0 : index
    %c0_9 = arith.constant 0 : index
    %14 = vector.load %arg5[%c0_8, %c0_9] : memref<8x256xf32, #tpu.memory_space<vmem>>, vector<2x256xf32>
    tpu.vector_store %arg5[%c0_8, %c0_9], %13 {strides = array<i32>} : memref<8x256xf32, #tpu.memory_space<vmem>>, vector<2x256xf32>,
    %15 = vector.extract_strided_slice %4 {offsets = [2, 0], sizes = [2, 256], strides = [1, 1]} : vector<7x256xf32> to vector<2x256xf32>
    %16 = math.exp %15 : vector<2x256xf32>
    %17 = vector.extract_strided_slice %16 {offsets = [0, 0], sizes = [1, 256], strides = [1, 1]} : vector<2x256xf32> to vector<1x256xf32>
    %c0_10 = arith.constant 0 : index
    %c0_11 = arith.constant 0 : index
    %18 = memref.load %arg1[%c0_10, %c0_11] : memref<3x2xf32, #tpu.memory_space<smem>>
    %19 = vector.broadcast %18 : f32 to vector<1x256xf32>
    %20 = arith.mulf %17, %19 : vector<1x256xf32>
    %c2 = arith.constant 2 : index
    %c0_12 = arith.constant 0 : index
    %21 = vector.load %arg5[%c2, %c0_12] : memref<8x256xf32, #tpu.memory_space<vmem>>, vector<1x256xf32>
    tpu.vector_store %arg5[%c2, %c0_12], %20 {strides = array<i32>} : memref<8x256xf32, #tpu.memory_space<vmem>>, vector<1x256xf32>,
    %22 = vector.extract_strided_slice %16 {offsets = [1, 0], sizes = [1, 256], strides = [1, 1]} : vector<2x256xf32> to vector<1x256xf32>
    %c0_13 = arith.constant 0 : index
    %c1 = arith.constant 1 : index
    %23 = memref.load %arg1[%c0_13, %c1] : memref<3x2xf32, #tpu.memory_space<smem>>
    %24 = vector.broadcast %23 : f32 to vector<1x256xf32>
    %25 = arith.mulf %22, %24 : vector<1x256xf32>
    %c3 = arith.constant 3 : index
    %c0_14 = arith.constant 0 : index
    %26 = vector.load %arg5[%c3, %c0_14] : memref<8x256xf32, #tpu.memory_space<vmem>>, vector<1x256xf32>
    tpu.vector_store %arg5[%c3, %c0_14], %25 {strides = array<i32>} : memref<8x256xf32, #tpu.memory_space<vmem>>, vector<1x256xf32>,
    %27 = vector.extract_strided_slice %4 {offsets = [4, 0], sizes = [3, 256], strides = [1, 1]} : vector<7x256xf32> to vector<3x256xf32>
    %28 = arith.negf %27 : vector<3x256xf32>
    %29 = math.exp %28 : vector<3x256xf32>
    %cst_15 = arith.constant 1.000000e+00 : f32
    %30 = vector.broadcast %cst_15 : f32 to vector<3x256xf32>
    %31 = arith.addf %30, %29 : vector<3x256xf32>
    %32 = arith.divf %30, %31 : vector<3x256xf32>
    %c4 = arith.constant 4 : index
    %c0_16 = arith.constant 0 : index
    %33 = vector.load %arg5[%c4, %c0_16] : memref<8x256xf32, #tpu.memory_space<vmem>>, vector<3x256xf32>
    tpu.vector_store %arg5[%c4, %c0_16], %32 {strides = array<i32>} : memref<8x256xf32, #tpu.memory_space<vmem>>, vector<3x256xf32>,
    %c0_17 = arith.constant 0 : index
    %c0_18 = arith.constant 0 : index
    %34 = vector.load %arg5[%c0_17, %c0_18] : memref<8x256xf32, #tpu.memory_space<vmem>>, vector<8x256xf32>
    %35 = tpu.transpose %34, [1, 0] : vector<8x256xf32> -> vector<256x8xf32>
    %36 = vector.extract_strided_slice %35 {offsets = [0, 0], sizes = [256, 7], strides = [1, 1]} : vector<256x8xf32> to vector<256x7xf32>
    %c0_19 = arith.constant 0 : index
    %c0_20 = arith.constant 0 : index
    %c0_21 = arith.constant 0 : index
    %c0_22 = arith.constant 0 : index
    %37 = vector.load %arg4[%c0_19, %c0_20, %c0_21, %c0_22] : memref<1x3x256x7xf32, #tpu.memory_space<vmem>>, vector<1x1x256x7xf32>
    %38 = vector.shape_cast %37 : vector<1x1x256x7xf32> to vector<256x7xf32>
    %39 = vector.shape_cast %36 : vector<256x7xf32> to vector<1x1x256x7xf32>
    tpu.vector_store %arg4[%c0_19, %c0_20, %c0_21, %c0_22], %39 {strides = array<i32>} : memref<1x3x256x7xf32, #tpu.memory_space<vmem>>, vector<1x1x256x7xf32>,
    %c0_23 = arith.constant 0 : index
    %c1_24 = arith.constant 1 : index
    %c0_25 = arith.constant 0 : index
    %c0_26 = arith.constant 0 : index
    %40 = vector.load %arg3[%c0_23, %c1_24, %c0_25, %c0_26] : memref<1x3x7x256xf32, #tpu.memory_space<vmem>>, vector<1x1x7x256xf32>
    %41 = vector.shape_cast %40 : vector<1x1x7x256xf32> to vector<7x256xf32>
    %42 = vector.extract_strided_slice %41 {offsets = [0, 0], sizes = [2, 256], strides = [1, 1]} : vector<7x256xf32> to vector<2x256xf32>
    %43 = arith.negf %42 : vector<2x256xf32>
    %44 = math.exp %43 : vector<2x256xf32>
    %cst_27 = arith.constant 1.000000e+00 : f32
    %45 = vector.broadcast %cst_27 : f32 to vector<2x256xf32>
    %46 = arith.addf %45, %44 : vector<2x256xf32>
    %47 = arith.divf %45, %46 : vector<2x256xf32>
    %48 = arith.addf %47, %0 : vector<2x256xf32>
    %cst_28 = arith.constant 4.000000e+00 : f32
    %49 = vector.broadcast %cst_28 : f32 to vector<2x256xf32>
    %50 = arith.mulf %48, %49 : vector<2x256xf32>
    %c0_29 = arith.constant 0 : index
    %c0_30 = arith.constant 0 : index
    %51 = vector.load %arg5[%c0_29, %c0_30] : memref<8x256xf32, #tpu.memory_space<vmem>>, vector<2x256xf32>
    tpu.vector_store %arg5[%c0_29, %c0_30], %50 {strides = array<i32>} : memref<8x256xf32, #tpu.memory_space<vmem>>, vector<2x256xf32>,
    %52 = vector.extract_strided_slice %41 {offsets = [2, 0], sizes = [2, 256], strides = [1, 1]} : vector<7x256xf32> to vector<2x256xf32>
    %53 = math.exp %52 : vector<2x256xf32>
    %54 = vector.extract_strided_slice %53 {offsets = [0, 0], sizes = [1, 256], strides = [1, 1]} : vector<2x256xf32> to vector<1x256xf32>
    %c1_31 = arith.constant 1 : index
    %c0_32 = arith.constant 0 : index
    %55 = memref.load %arg1[%c1_31, %c0_32] : memref<3x2xf32, #tpu.memory_space<smem>>
    %56 = vector.broadcast %55 : f32 to vector<1x256xf32>
    %57 = arith.mulf %54, %56 : vector<1x256xf32>
    %c2_33 = arith.constant 2 : index
    %c0_34 = arith.constant 0 : index
    %58 = vector.load %arg5[%c2_33, %c0_34] : memref<8x256xf32, #tpu.memory_space<vmem>>, vector<1x256xf32>
    tpu.vector_store %arg5[%c2_33, %c0_34], %57 {strides = array<i32>} : memref<8x256xf32, #tpu.memory_space<vmem>>, vector<1x256xf32>,
    %59 = vector.extract_strided_slice %53 {offsets = [1, 0], sizes = [1, 256], strides = [1, 1]} : vector<2x256xf32> to vector<1x256xf32>
    %c1_35 = arith.constant 1 : index
    %c1_36 = arith.constant 1 : index
    %60 = memref.load %arg1[%c1_35, %c1_36] : memref<3x2xf32, #tpu.memory_space<smem>>
    %61 = vector.broadcast %60 : f32 to vector<1x256xf32>
    %62 = arith.mulf %59, %61 : vector<1x256xf32>
    %c3_37 = arith.constant 3 : index
    %c0_38 = arith.constant 0 : index
    %63 = vector.load %arg5[%c3_37, %c0_38] : memref<8x256xf32, #tpu.memory_space<vmem>>, vector<1x256xf32>
    tpu.vector_store %arg5[%c3_37, %c0_38], %62 {strides = array<i32>} : memref<8x256xf32, #tpu.memory_space<vmem>>, vector<1x256xf32>,
    %64 = vector.extract_strided_slice %41 {offsets = [4, 0], sizes = [3, 256], strides = [1, 1]} : vector<7x256xf32> to vector<3x256xf32>
    %65 = arith.negf %64 : vector<3x256xf32>
    %66 = math.exp %65 : vector<3x256xf32>
    %cst_39 = arith.constant 1.000000e+00 : f32
    %67 = vector.broadcast %cst_39 : f32 to vector<3x256xf32>
    %68 = arith.addf %67, %66 : vector<3x256xf32>
    %69 = arith.divf %67, %68 : vector<3x256xf32>
    %c4_40 = arith.constant 4 : index
    %c0_41 = arith.constant 0 : index
    %70 = vector.load %arg5[%c4_40, %c0_41] : memref<8x256xf32, #tpu.memory_space<vmem>>, vector<3x256xf32>
    tpu.vector_store %arg5[%c4_40, %c0_41], %69 {strides = array<i32>} : memref<8x256xf32, #tpu.memory_space<vmem>>, vector<3x256xf32>,
    %c0_42 = arith.constant 0 : index
    %c0_43 = arith.constant 0 : index
    %71 = vector.load %arg5[%c0_42, %c0_43] : memref<8x256xf32, #tpu.memory_space<vmem>>, vector<8x256xf32>
    %72 = tpu.transpose %71, [1, 0] : vector<8x256xf32> -> vector<256x8xf32>
    %73 = vector.extract_strided_slice %72 {offsets = [0, 0], sizes = [256, 7], strides = [1, 1]} : vector<256x8xf32> to vector<256x7xf32>
    %c0_44 = arith.constant 0 : index
    %c1_45 = arith.constant 1 : index
    %c0_46 = arith.constant 0 : index
    %c0_47 = arith.constant 0 : index
    %74 = vector.load %arg4[%c0_44, %c1_45, %c0_46, %c0_47] : memref<1x3x256x7xf32, #tpu.memory_space<vmem>>, vector<1x1x256x7xf32>
    %75 = vector.shape_cast %74 : vector<1x1x256x7xf32> to vector<256x7xf32>
    %76 = vector.shape_cast %73 : vector<256x7xf32> to vector<1x1x256x7xf32>
    tpu.vector_store %arg4[%c0_44, %c1_45, %c0_46, %c0_47], %76 {strides = array<i32>} : memref<1x3x256x7xf32, #tpu.memory_space<vmem>>, vector<1x1x256x7xf32>,
    %c0_48 = arith.constant 0 : index
    %c2_49 = arith.constant 2 : index
    %c0_50 = arith.constant 0 : index
    %c0_51 = arith.constant 0 : index
    %77 = vector.load %arg3[%c0_48, %c2_49, %c0_50, %c0_51] : memref<1x3x7x256xf32, #tpu.memory_space<vmem>>, vector<1x1x7x256xf32>
    %78 = vector.shape_cast %77 : vector<1x1x7x256xf32> to vector<7x256xf32>
    %79 = vector.extract_strided_slice %78 {offsets = [0, 0], sizes = [2, 256], strides = [1, 1]} : vector<7x256xf32> to vector<2x256xf32>
    %80 = arith.negf %79 : vector<2x256xf32>
    %81 = math.exp %80 : vector<2x256xf32>
    %cst_52 = arith.constant 1.000000e+00 : f32
    %82 = vector.broadcast %cst_52 : f32 to vector<2x256xf32>
    %83 = arith.addf %82, %81 : vector<2x256xf32>
    %84 = arith.divf %82, %83 : vector<2x256xf32>
    %85 = arith.addf %84, %0 : vector<2x256xf32>
    %cst_53 = arith.constant 4.000000e+00 : f32
    %86 = vector.broadcast %cst_53 : f32 to vector<2x256xf32>
    %87 = arith.mulf %85, %86 : vector<2x256xf32>
    %c0_54 = arith.constant 0 : index
    %c0_55 = arith.constant 0 : index
    %88 = vector.load %arg5[%c0_54, %c0_55] : memref<8x256xf32, #tpu.memory_space<vmem>>, vector<2x256xf32>
    tpu.vector_store %arg5[%c0_54, %c0_55], %87 {strides = array<i32>} : memref<8x256xf32, #tpu.memory_space<vmem>>, vector<2x256xf32>,
    %89 = vector.extract_strided_slice %78 {offsets = [2, 0], sizes = [2, 256], strides = [1, 1]} : vector<7x256xf32> to vector<2x256xf32>
    %90 = math.exp %89 : vector<2x256xf32>
    %91 = vector.extract_strided_slice %90 {offsets = [0, 0], sizes = [1, 256], strides = [1, 1]} : vector<2x256xf32> to vector<1x256xf32>
    %c2_56 = arith.constant 2 : index
    %c0_57 = arith.constant 0 : index
    %92 = memref.load %arg1[%c2_56, %c0_57] : memref<3x2xf32, #tpu.memory_space<smem>>
    %93 = vector.broadcast %92 : f32 to vector<1x256xf32>
    %94 = arith.mulf %91, %93 : vector<1x256xf32>
    %c2_58 = arith.constant 2 : index
    %c0_59 = arith.constant 0 : index
    %95 = vector.load %arg5[%c2_58, %c0_59] : memref<8x256xf32, #tpu.memory_space<vmem>>, vector<1x256xf32>
    tpu.vector_store %arg5[%c2_58, %c0_59], %94 {strides = array<i32>} : memref<8x256xf32, #tpu.memory_space<vmem>>, vector<1x256xf32>,
    %96 = vector.extract_strided_slice %90 {offsets = [1, 0], sizes = [1, 256], strides = [1, 1]} : vector<2x256xf32> to vector<1x256xf32>
    %c2_60 = arith.constant 2 : index
    %c1_61 = arith.constant 1 : index
    %97 = memref.load %arg1[%c2_60, %c1_61] : memref<3x2xf32, #tpu.memory_space<smem>>
    %98 = vector.broadcast %97 : f32 to vector<1x256xf32>
    %99 = arith.mulf %96, %98 : vector<1x256xf32>
    %c3_62 = arith.constant 3 : index
    %c0_63 = arith.constant 0 : index
    %100 = vector.load %arg5[%c3_62, %c0_63] : memref<8x256xf32, #tpu.memory_space<vmem>>, vector<1x256xf32>
    tpu.vector_store %arg5[%c3_62, %c0_63], %99 {strides = array<i32>} : memref<8x256xf32, #tpu.memory_space<vmem>>, vector<1x256xf32>,
    %101 = vector.extract_strided_slice %78 {offsets = [4, 0], sizes = [3, 256], strides = [1, 1]} : vector<7x256xf32> to vector<3x256xf32>
    %102 = arith.negf %101 : vector<3x256xf32>
    %103 = math.exp %102 : vector<3x256xf32>
    %cst_64 = arith.constant 1.000000e+00 : f32
    %104 = vector.broadcast %cst_64 : f32 to vector<3x256xf32>
    %105 = arith.addf %104, %103 : vector<3x256xf32>
    %106 = arith.divf %104, %105 : vector<3x256xf32>
    %c4_65 = arith.constant 4 : index
    %c0_66 = arith.constant 0 : index
    %107 = vector.load %arg5[%c4_65, %c0_66] : memref<8x256xf32, #tpu.memory_space<vmem>>, vector<3x256xf32>
    tpu.vector_store %arg5[%c4_65, %c0_66], %106 {strides = array<i32>} : memref<8x256xf32, #tpu.memory_space<vmem>>, vector<3x256xf32>,
    %c0_67 = arith.constant 0 : index
    %c0_68 = arith.constant 0 : index
    %108 = vector.load %arg5[%c0_67, %c0_68] : memref<8x256xf32, #tpu.memory_space<vmem>>, vector<8x256xf32>
    %109 = tpu.transpose %108, [1, 0] : vector<8x256xf32> -> vector<256x8xf32>
    %110 = vector.extract_strided_slice %109 {offsets = [0, 0], sizes = [256, 7], strides = [1, 1]} : vector<256x8xf32> to vector<256x7xf32>
    %c0_69 = arith.constant 0 : index
    %c2_70 = arith.constant 2 : index
    %c0_71 = arith.constant 0 : index
    %c0_72 = arith.constant 0 : index
    %111 = vector.load %arg4[%c0_69, %c2_70, %c0_71, %c0_72] : memref<1x3x256x7xf32, #tpu.memory_space<vmem>>, vector<1x1x256x7xf32>
    %112 = vector.shape_cast %111 : vector<1x1x256x7xf32> to vector<256x7xf32>
    %113 = vector.shape_cast %110 : vector<256x7xf32> to vector<1x1x256x7xf32>
    tpu.vector_store %arg4[%c0_69, %c2_70, %c0_71, %c0_72], %113 {strides = array<i32>} : memref<1x3x256x7xf32, #tpu.memory_space<vmem>>, vector<1x1x256x7xf32>,
    return
  }
  func.func @transform_0(%arg0: i32) -> (i32, i32) {
    %c0_i32 = arith.constant 0 : i32
    %c0_i32_0 = arith.constant 0 : i32
    %c0_i32_1 = arith.constant 0 : i32
    return %c0_i32, %c0_i32_0 : i32, i32
  }
  func.func @transform_1(%arg0: i32) -> (i32, i32) {
    %c0_i32 = arith.constant 0 : i32
    %c0_i32_0 = arith.constant 0 : i32
    %c0_i32_1 = arith.constant 0 : i32
    return %c0_i32, %c0_i32_0 : i32, i32
  }
  func.func @transform_2(%arg0: i32) -> (i32, i32, i32, i32) {
    %c0_i32 = arith.constant 0 : i32
    %c0_i32_0 = arith.constant 0 : i32
    %c0_i32_1 = arith.constant 0 : i32
    %c0_i32_2 = arith.constant 0 : i32
    return %arg0, %c0_i32, %c0_i32_0, %c0_i32_1 : i32, i32, i32, i32
  }
  func.func @transform_3(%arg0: i32) -> (i32, i32, i32, i32) {
    %c0_i32 = arith.constant 0 : i32
    %c0_i32_0 = arith.constant 0 : i32
    %c0_i32_1 = arith.constant 0 : i32
    %c0_i32_2 = arith.constant 0 : i32
    return %arg0, %c0_i32, %c0_i32_0, %c0_i32_1 : i32, i32, i32, i32
  }
}

module attributes {stable_mosaic.version = 11 : i64} {
  func.func @_detection_kernel(%arg0: i32, %arg1: memref<3x2xf32, #tpu.memory_space<smem>>, %arg2: memref<2x256xf32, #tpu.memory_space<vmem>>, %arg3: memref<1x3x7x256xf32, #tpu.memory_space<vmem>>, %arg4: memref<1x3x7x256xf32, #tpu.memory_space<vmem>>, %arg5: memref<8x256xf32, #tpu.memory_space<vmem>>) attributes {dimension_semantics = [#tpu.dimension_semantics<parallel>], iteration_bounds = array<i64: 2>, scalar_prefetch = 0 : i64, scratch_operands = 1 : i64, tpu.core_type = #tpu.core_type<tc>, window_params = [{transform_indices = @transform_0, window_bounds = array<i64: 3, 2>}, {pipeline_mode = #tpu.pipeline_mode<synchronous>, transform_indices = @transform_1, window_bounds = array<i64: 2, 256>}, {transform_indices = @transform_2, window_bounds = array<i64: 1, 3, 7, 256>}, {transform_indices = @transform_3, window_bounds = array<i64: 1, 3, 7, 256>}]} {
    %c0 = arith.constant 0 : index
    %c0_0 = arith.constant 0 : index
    %0 = vector.load %arg2[%c0, %c0_0] : memref<2x256xf32, #tpu.memory_space<vmem>>, vector<2x256xf32>
    %cst = arith.constant 0.000000e+00 : f32
    %1 = vector.broadcast %cst : f32 to vector<1x256xf32>
    %c7 = arith.constant 7 : index
    %c0_1 = arith.constant 0 : index
    %2 = vector.load %arg5[%c7, %c0_1] : memref<8x256xf32, #tpu.memory_space<vmem>>, vector<1x256xf32>
    tpu.vector_store %arg5[%c7, %c0_1], %1 {strides = array<i32>} : memref<8x256xf32, #tpu.memory_space<vmem>>, vector<1x256xf32>,
    %c0_2 = arith.constant 0 : index
    %c0_3 = arith.constant 0 : index
    %c0_4 = arith.constant 0 : index
    %c0_5 = arith.constant 0 : index
    %3 = vector.load %arg3[%c0_2, %c0_3, %c0_4, %c0_5] : memref<1x3x7x256xf32, #tpu.memory_space<vmem>>, vector<1x1x7x256xf32>
    %4 = vector.shape_cast %3 : vector<1x1x7x256xf32> to vector<7x256xf32>
    %5 = vector.extract_strided_slice %4 {offsets = [0, 0], sizes = [2, 256], strides = [1, 1]} : vector<7x256xf32> to vector<2x256xf32>
    %6 = arith.negf %5 : vector<2x256xf32>
    %7 = math.exp %6 : vector<2x256xf32>
    %cst_6 = arith.constant 1.000000e+00 : f32
    %8 = vector.broadcast %cst_6 : f32 to vector<2x256xf32>
    %9 = arith.addf %8, %7 : vector<2x256xf32>
    %10 = arith.divf %8, %9 : vector<2x256xf32>
    %11 = arith.addf %10, %0 : vector<2x256xf32>
    %cst_7 = arith.constant 4.000000e+00 : f32
    %12 = vector.broadcast %cst_7 : f32 to vector<2x256xf32>
    %13 = arith.mulf %11, %12 : vector<2x256xf32>
    %c0_8 = arith.constant 0 : index
    %c0_9 = arith.constant 0 : index
    %14 = vector.load %arg5[%c0_8, %c0_9] : memref<8x256xf32, #tpu.memory_space<vmem>>, vector<2x256xf32>
    tpu.vector_store %arg5[%c0_8, %c0_9], %13 {strides = array<i32>} : memref<8x256xf32, #tpu.memory_space<vmem>>, vector<2x256xf32>,
    %15 = vector.extract_strided_slice %4 {offsets = [2, 0], sizes = [2, 256], strides = [1, 1]} : vector<7x256xf32> to vector<2x256xf32>
    %16 = math.exp %15 : vector<2x256xf32>
    %17 = vector.extract_strided_slice %16 {offsets = [0, 0], sizes = [1, 256], strides = [1, 1]} : vector<2x256xf32> to vector<1x256xf32>
    %c0_10 = arith.constant 0 : index
    %c0_11 = arith.constant 0 : index
    %18 = memref.load %arg1[%c0_10, %c0_11] : memref<3x2xf32, #tpu.memory_space<smem>>
    %19 = vector.broadcast %18 : f32 to vector<1x256xf32>
    %20 = arith.mulf %17, %19 : vector<1x256xf32>
    %c2 = arith.constant 2 : index
    %c0_12 = arith.constant 0 : index
    %21 = vector.load %arg5[%c2, %c0_12] : memref<8x256xf32, #tpu.memory_space<vmem>>, vector<1x256xf32>
    tpu.vector_store %arg5[%c2, %c0_12], %20 {strides = array<i32>} : memref<8x256xf32, #tpu.memory_space<vmem>>, vector<1x256xf32>,
    %22 = vector.extract_strided_slice %16 {offsets = [1, 0], sizes = [1, 256], strides = [1, 1]} : vector<2x256xf32> to vector<1x256xf32>
    %c0_13 = arith.constant 0 : index
    %c1 = arith.constant 1 : index
    %23 = memref.load %arg1[%c0_13, %c1] : memref<3x2xf32, #tpu.memory_space<smem>>
    %24 = vector.broadcast %23 : f32 to vector<1x256xf32>
    %25 = arith.mulf %22, %24 : vector<1x256xf32>
    %c3 = arith.constant 3 : index
    %c0_14 = arith.constant 0 : index
    %26 = vector.load %arg5[%c3, %c0_14] : memref<8x256xf32, #tpu.memory_space<vmem>>, vector<1x256xf32>
    tpu.vector_store %arg5[%c3, %c0_14], %25 {strides = array<i32>} : memref<8x256xf32, #tpu.memory_space<vmem>>, vector<1x256xf32>,
    %27 = vector.extract_strided_slice %4 {offsets = [4, 0], sizes = [3, 256], strides = [1, 1]} : vector<7x256xf32> to vector<3x256xf32>
    %28 = arith.negf %27 : vector<3x256xf32>
    %29 = math.exp %28 : vector<3x256xf32>
    %cst_15 = arith.constant 1.000000e+00 : f32
    %30 = vector.broadcast %cst_15 : f32 to vector<3x256xf32>
    %31 = arith.addf %30, %29 : vector<3x256xf32>
    %32 = arith.divf %30, %31 : vector<3x256xf32>
    %c4 = arith.constant 4 : index
    %c0_16 = arith.constant 0 : index
    %33 = vector.load %arg5[%c4, %c0_16] : memref<8x256xf32, #tpu.memory_space<vmem>>, vector<3x256xf32>
    tpu.vector_store %arg5[%c4, %c0_16], %32 {strides = array<i32>} : memref<8x256xf32, #tpu.memory_space<vmem>>, vector<3x256xf32>,
    %c0_17 = arith.constant 0 : index
    %c0_18 = arith.constant 0 : index
    %34 = vector.load %arg5[%c0_17, %c0_18] : memref<8x256xf32, #tpu.memory_space<vmem>>, vector<7x256xf32>
    %c0_19 = arith.constant 0 : index
    %c0_20 = arith.constant 0 : index
    %c0_21 = arith.constant 0 : index
    %c0_22 = arith.constant 0 : index
    %35 = vector.load %arg4[%c0_19, %c0_20, %c0_21, %c0_22] : memref<1x3x7x256xf32, #tpu.memory_space<vmem>>, vector<1x1x7x256xf32>
    %36 = vector.shape_cast %35 : vector<1x1x7x256xf32> to vector<7x256xf32>
    %37 = vector.shape_cast %34 : vector<7x256xf32> to vector<1x1x7x256xf32>
    tpu.vector_store %arg4[%c0_19, %c0_20, %c0_21, %c0_22], %37 {strides = array<i32>} : memref<1x3x7x256xf32, #tpu.memory_space<vmem>>, vector<1x1x7x256xf32>,
    %c0_23 = arith.constant 0 : index
    %c1_24 = arith.constant 1 : index
    %c0_25 = arith.constant 0 : index
    %c0_26 = arith.constant 0 : index
    %38 = vector.load %arg3[%c0_23, %c1_24, %c0_25, %c0_26] : memref<1x3x7x256xf32, #tpu.memory_space<vmem>>, vector<1x1x7x256xf32>
    %39 = vector.shape_cast %38 : vector<1x1x7x256xf32> to vector<7x256xf32>
    %40 = vector.extract_strided_slice %39 {offsets = [0, 0], sizes = [2, 256], strides = [1, 1]} : vector<7x256xf32> to vector<2x256xf32>
    %41 = arith.negf %40 : vector<2x256xf32>
    %42 = math.exp %41 : vector<2x256xf32>
    %cst_27 = arith.constant 1.000000e+00 : f32
    %43 = vector.broadcast %cst_27 : f32 to vector<2x256xf32>
    %44 = arith.addf %43, %42 : vector<2x256xf32>
    %45 = arith.divf %43, %44 : vector<2x256xf32>
    %46 = arith.addf %45, %0 : vector<2x256xf32>
    %cst_28 = arith.constant 4.000000e+00 : f32
    %47 = vector.broadcast %cst_28 : f32 to vector<2x256xf32>
    %48 = arith.mulf %46, %47 : vector<2x256xf32>
    %c0_29 = arith.constant 0 : index
    %c0_30 = arith.constant 0 : index
    %49 = vector.load %arg5[%c0_29, %c0_30] : memref<8x256xf32, #tpu.memory_space<vmem>>, vector<2x256xf32>
    tpu.vector_store %arg5[%c0_29, %c0_30], %48 {strides = array<i32>} : memref<8x256xf32, #tpu.memory_space<vmem>>, vector<2x256xf32>,
    %50 = vector.extract_strided_slice %39 {offsets = [2, 0], sizes = [2, 256], strides = [1, 1]} : vector<7x256xf32> to vector<2x256xf32>
    %51 = math.exp %50 : vector<2x256xf32>
    %52 = vector.extract_strided_slice %51 {offsets = [0, 0], sizes = [1, 256], strides = [1, 1]} : vector<2x256xf32> to vector<1x256xf32>
    %c1_31 = arith.constant 1 : index
    %c0_32 = arith.constant 0 : index
    %53 = memref.load %arg1[%c1_31, %c0_32] : memref<3x2xf32, #tpu.memory_space<smem>>
    %54 = vector.broadcast %53 : f32 to vector<1x256xf32>
    %55 = arith.mulf %52, %54 : vector<1x256xf32>
    %c2_33 = arith.constant 2 : index
    %c0_34 = arith.constant 0 : index
    %56 = vector.load %arg5[%c2_33, %c0_34] : memref<8x256xf32, #tpu.memory_space<vmem>>, vector<1x256xf32>
    tpu.vector_store %arg5[%c2_33, %c0_34], %55 {strides = array<i32>} : memref<8x256xf32, #tpu.memory_space<vmem>>, vector<1x256xf32>,
    %57 = vector.extract_strided_slice %51 {offsets = [1, 0], sizes = [1, 256], strides = [1, 1]} : vector<2x256xf32> to vector<1x256xf32>
    %c1_35 = arith.constant 1 : index
    %c1_36 = arith.constant 1 : index
    %58 = memref.load %arg1[%c1_35, %c1_36] : memref<3x2xf32, #tpu.memory_space<smem>>
    %59 = vector.broadcast %58 : f32 to vector<1x256xf32>
    %60 = arith.mulf %57, %59 : vector<1x256xf32>
    %c3_37 = arith.constant 3 : index
    %c0_38 = arith.constant 0 : index
    %61 = vector.load %arg5[%c3_37, %c0_38] : memref<8x256xf32, #tpu.memory_space<vmem>>, vector<1x256xf32>
    tpu.vector_store %arg5[%c3_37, %c0_38], %60 {strides = array<i32>} : memref<8x256xf32, #tpu.memory_space<vmem>>, vector<1x256xf32>,
    %62 = vector.extract_strided_slice %39 {offsets = [4, 0], sizes = [3, 256], strides = [1, 1]} : vector<7x256xf32> to vector<3x256xf32>
    %63 = arith.negf %62 : vector<3x256xf32>
    %64 = math.exp %63 : vector<3x256xf32>
    %cst_39 = arith.constant 1.000000e+00 : f32
    %65 = vector.broadcast %cst_39 : f32 to vector<3x256xf32>
    %66 = arith.addf %65, %64 : vector<3x256xf32>
    %67 = arith.divf %65, %66 : vector<3x256xf32>
    %c4_40 = arith.constant 4 : index
    %c0_41 = arith.constant 0 : index
    %68 = vector.load %arg5[%c4_40, %c0_41] : memref<8x256xf32, #tpu.memory_space<vmem>>, vector<3x256xf32>
    tpu.vector_store %arg5[%c4_40, %c0_41], %67 {strides = array<i32>} : memref<8x256xf32, #tpu.memory_space<vmem>>, vector<3x256xf32>,
    %c0_42 = arith.constant 0 : index
    %c0_43 = arith.constant 0 : index
    %69 = vector.load %arg5[%c0_42, %c0_43] : memref<8x256xf32, #tpu.memory_space<vmem>>, vector<7x256xf32>
    %c0_44 = arith.constant 0 : index
    %c1_45 = arith.constant 1 : index
    %c0_46 = arith.constant 0 : index
    %c0_47 = arith.constant 0 : index
    %70 = vector.load %arg4[%c0_44, %c1_45, %c0_46, %c0_47] : memref<1x3x7x256xf32, #tpu.memory_space<vmem>>, vector<1x1x7x256xf32>
    %71 = vector.shape_cast %70 : vector<1x1x7x256xf32> to vector<7x256xf32>
    %72 = vector.shape_cast %69 : vector<7x256xf32> to vector<1x1x7x256xf32>
    tpu.vector_store %arg4[%c0_44, %c1_45, %c0_46, %c0_47], %72 {strides = array<i32>} : memref<1x3x7x256xf32, #tpu.memory_space<vmem>>, vector<1x1x7x256xf32>,
    %c0_48 = arith.constant 0 : index
    %c2_49 = arith.constant 2 : index
    %c0_50 = arith.constant 0 : index
    %c0_51 = arith.constant 0 : index
    %73 = vector.load %arg3[%c0_48, %c2_49, %c0_50, %c0_51] : memref<1x3x7x256xf32, #tpu.memory_space<vmem>>, vector<1x1x7x256xf32>
    %74 = vector.shape_cast %73 : vector<1x1x7x256xf32> to vector<7x256xf32>
    %75 = vector.extract_strided_slice %74 {offsets = [0, 0], sizes = [2, 256], strides = [1, 1]} : vector<7x256xf32> to vector<2x256xf32>
    %76 = arith.negf %75 : vector<2x256xf32>
    %77 = math.exp %76 : vector<2x256xf32>
    %cst_52 = arith.constant 1.000000e+00 : f32
    %78 = vector.broadcast %cst_52 : f32 to vector<2x256xf32>
    %79 = arith.addf %78, %77 : vector<2x256xf32>
    %80 = arith.divf %78, %79 : vector<2x256xf32>
    %81 = arith.addf %80, %0 : vector<2x256xf32>
    %cst_53 = arith.constant 4.000000e+00 : f32
    %82 = vector.broadcast %cst_53 : f32 to vector<2x256xf32>
    %83 = arith.mulf %81, %82 : vector<2x256xf32>
    %c0_54 = arith.constant 0 : index
    %c0_55 = arith.constant 0 : index
    %84 = vector.load %arg5[%c0_54, %c0_55] : memref<8x256xf32, #tpu.memory_space<vmem>>, vector<2x256xf32>
    tpu.vector_store %arg5[%c0_54, %c0_55], %83 {strides = array<i32>} : memref<8x256xf32, #tpu.memory_space<vmem>>, vector<2x256xf32>,
    %85 = vector.extract_strided_slice %74 {offsets = [2, 0], sizes = [2, 256], strides = [1, 1]} : vector<7x256xf32> to vector<2x256xf32>
    %86 = math.exp %85 : vector<2x256xf32>
    %87 = vector.extract_strided_slice %86 {offsets = [0, 0], sizes = [1, 256], strides = [1, 1]} : vector<2x256xf32> to vector<1x256xf32>
    %c2_56 = arith.constant 2 : index
    %c0_57 = arith.constant 0 : index
    %88 = memref.load %arg1[%c2_56, %c0_57] : memref<3x2xf32, #tpu.memory_space<smem>>
    %89 = vector.broadcast %88 : f32 to vector<1x256xf32>
    %90 = arith.mulf %87, %89 : vector<1x256xf32>
    %c2_58 = arith.constant 2 : index
    %c0_59 = arith.constant 0 : index
    %91 = vector.load %arg5[%c2_58, %c0_59] : memref<8x256xf32, #tpu.memory_space<vmem>>, vector<1x256xf32>
    tpu.vector_store %arg5[%c2_58, %c0_59], %90 {strides = array<i32>} : memref<8x256xf32, #tpu.memory_space<vmem>>, vector<1x256xf32>,
    %92 = vector.extract_strided_slice %86 {offsets = [1, 0], sizes = [1, 256], strides = [1, 1]} : vector<2x256xf32> to vector<1x256xf32>
    %c2_60 = arith.constant 2 : index
    %c1_61 = arith.constant 1 : index
    %93 = memref.load %arg1[%c2_60, %c1_61] : memref<3x2xf32, #tpu.memory_space<smem>>
    %94 = vector.broadcast %93 : f32 to vector<1x256xf32>
    %95 = arith.mulf %92, %94 : vector<1x256xf32>
    %c3_62 = arith.constant 3 : index
    %c0_63 = arith.constant 0 : index
    %96 = vector.load %arg5[%c3_62, %c0_63] : memref<8x256xf32, #tpu.memory_space<vmem>>, vector<1x256xf32>
    tpu.vector_store %arg5[%c3_62, %c0_63], %95 {strides = array<i32>} : memref<8x256xf32, #tpu.memory_space<vmem>>, vector<1x256xf32>,
    %97 = vector.extract_strided_slice %74 {offsets = [4, 0], sizes = [3, 256], strides = [1, 1]} : vector<7x256xf32> to vector<3x256xf32>
    %98 = arith.negf %97 : vector<3x256xf32>
    %99 = math.exp %98 : vector<3x256xf32>
    %cst_64 = arith.constant 1.000000e+00 : f32
    %100 = vector.broadcast %cst_64 : f32 to vector<3x256xf32>
    %101 = arith.addf %100, %99 : vector<3x256xf32>
    %102 = arith.divf %100, %101 : vector<3x256xf32>
    %c4_65 = arith.constant 4 : index
    %c0_66 = arith.constant 0 : index
    %103 = vector.load %arg5[%c4_65, %c0_66] : memref<8x256xf32, #tpu.memory_space<vmem>>, vector<3x256xf32>
    tpu.vector_store %arg5[%c4_65, %c0_66], %102 {strides = array<i32>} : memref<8x256xf32, #tpu.memory_space<vmem>>, vector<3x256xf32>,
    %c0_67 = arith.constant 0 : index
    %c0_68 = arith.constant 0 : index
    %104 = vector.load %arg5[%c0_67, %c0_68] : memref<8x256xf32, #tpu.memory_space<vmem>>, vector<7x256xf32>
    %c0_69 = arith.constant 0 : index
    %c2_70 = arith.constant 2 : index
    %c0_71 = arith.constant 0 : index
    %c0_72 = arith.constant 0 : index
    %105 = vector.load %arg4[%c0_69, %c2_70, %c0_71, %c0_72] : memref<1x3x7x256xf32, #tpu.memory_space<vmem>>, vector<1x1x7x256xf32>
    %106 = vector.shape_cast %105 : vector<1x1x7x256xf32> to vector<7x256xf32>
    %107 = vector.shape_cast %104 : vector<7x256xf32> to vector<1x1x7x256xf32>
    tpu.vector_store %arg4[%c0_69, %c2_70, %c0_71, %c0_72], %107 {strides = array<i32>} : memref<1x3x7x256xf32, #tpu.memory_space<vmem>>, vector<1x1x7x256xf32>,
    return
  }
  func.func @transform_0(%arg0: i32) -> (i32, i32) {
    %c0_i32 = arith.constant 0 : i32
    %c0_i32_0 = arith.constant 0 : i32
    %c0_i32_1 = arith.constant 0 : i32
    return %c0_i32, %c0_i32_0 : i32, i32
  }
  func.func @transform_1(%arg0: i32) -> (i32, i32) {
    %c0_i32 = arith.constant 0 : i32
    %c0_i32_0 = arith.constant 0 : i32
    %c0_i32_1 = arith.constant 0 : i32
    return %c0_i32, %c0_i32_0 : i32, i32
  }
  func.func @transform_2(%arg0: i32) -> (i32, i32, i32, i32) {
    %c0_i32 = arith.constant 0 : i32
    %c0_i32_0 = arith.constant 0 : i32
    %c0_i32_1 = arith.constant 0 : i32
    %c0_i32_2 = arith.constant 0 : i32
    return %arg0, %c0_i32, %c0_i32_0, %c0_i32_1 : i32, i32, i32, i32
  }
  func.func @transform_3(%arg0: i32) -> (i32, i32, i32, i32) {
    %c0_i32 = arith.constant 0 : i32
    %c0_i32_0 = arith.constant 0 : i32
    %c0_i32_1 = arith.constant 0 : i32
    %c0_i32_2 = arith.constant 0 : i32
    return %arg0, %c0_i32, %c0_i32_0, %c0_i32_1 : i32, i32, i32, i32
  }
}

</mosaic_0001>

<llo_original>
// kernel: tpu_custom_call.1
$region0: #{tpu_custom_call.1}
  #allocation0 [shape = 'u32[]', space=smem, size = 0x4, offset = 0x4, fixed_abs, tag = 'smem constant byte address 0x4 - core index']
  #allocation1 [shape = 'u32[144,128]{1,0:T(1,128)}', space=vmem, size = 0x12000, scoped, tag = 'internal scratch']
  #allocation2 [shape = 'f32[8,256]{1,0:T(8,128)}', space=vmem, size = 0x2000, scoped, tag = 'scratch operand']
  %s0 = inlined_call_operand.vmem [shape: f32[3,2], index: 0, kind: input, shape index: {}]
  %s1 = inlined_call_operand.vmem [shape: f32[2,256], index: 1, kind: input, shape index: {}]
  %s2 = inlined_call_operand.vmem [shape: f32[2,3,7,256], index: 2, kind: input, shape index: {}]
  %s3 = inlined_call_operand.vmem [shape: f32[2,3,256,7], index: 3, kind: output, shape index: {}]
  %s4 = sld [smem:[#allocation0]]
  $region49: #{tpu_custom_call.1} parent=0
    _
  %s6 = ssub.s32 1, %s4
  %s7 = scalar_select 0, %s6, %s4
  $region1: #{tpu_custom_call.1} parent=0
    #allocation3 [shape = 'u8[2048]{0}', space=smem, size = 0x800, scoped, tag = 'input window, operand 0, single buffered']
    #allocation4 [shape = 's32[2]{0}', space=sflag, size = 0x8, scoped, tag = 'scoped memory for tpu_custom_call.1']
    %8 = vsyncpa [#allocation4], 0
    loop: start=0, step=1, limit=4
    $region2: #{tpu_custom_call.1} parent=1 // loop_pre_header
      _
    $region3: #{tpu_custom_call.1} parent=1 // loop_header
      %s10 = sphi 0, %s14
      %p11 = scmp.ge.s32.totalorder %s10, 4
      %s18 = sphi 0, %s18
      %s20 = sphi 0, %s18
      %s21 = sphi 0, %s20
      %s35 = sphi 0, %s21
      %s39 = sphi 0, %s39
      %s41 = sphi 0, %s39
      %s42 = sphi 0, %s41
      %s56 = sphi 0, %s42
      %s62 = sphi 0, %s64
      %s65 = sphi 0, %s62
      %s66 = sphi 0, %s65
      %s82 = sphi 0, %s66
      %s88 = sphi 0, %s90
      %s91 = sphi 0, %s88
      %s92 = sphi 0, %s91
      %s108 = sphi 0, %s92
    $region4: #{tpu_custom_call.1} parent=1 // loop_header_branch
      %13 = sbr.rel (%p11) target = $region8
    $region5: #{tpu_custom_call.1} parent=1 // loop_body
      %s15 = ssub.s32 %s10, 1
      %s16 = ssub.s32 %s10, 2
      %s17 = sadd.s32 %s10, 1
      %s19 = sadd.s32 %s18, 1
      %p22 = scmp.eq.s32.totalorder %s10, 1
      %p23 = scmp.ne.s32.totalorder %s18, %s20
      %p24 = scmp.eq.s32.totalorder %s10, 0
      %p25 = por %p23, %p24
      %p26 = scmp.ne.s32.totalorder %s18, %s20
      %p27 = scmp.eq.s32.totalorder %s15, 1
      %p28 = por %p26, %p27
      %p29 = scmp.ne.s32.totalorder %s20, %s21
      %p30 = scmp.eq.s32.totalorder %s15, 0
      %p31 = por %p29, %p30
      %p32 = scmp.ne.s32.totalorder %s20, %s21
      %p33 = scmp.eq.s32.totalorder %s16, 1
      %p34 = por %p32, %p33
      %p36 = scmp.ne.s32.totalorder %s21, %s35
      %p37 = scmp.eq.s32.totalorder %s16, 0
      %p38 = por %p36, %p37
      %s40 = sadd.s32 %s39, 1
      %p43 = scmp.eq.s32.totalorder %s10, 1
      %p44 = scmp.ne.s32.totalorder %s39, %s41
      %p45 = scmp.eq.s32.totalorder %s10, 0
      %p46 = por %p44, %p45
      %p47 = scmp.ne.s32.totalorder %s39, %s41
      %p48 = scmp.eq.s32.totalorder %s15, 1
      %p49 = por %p47, %p48
      %p50 = scmp.ne.s32.totalorder %s41, %s42
      %p51 = scmp.eq.s32.totalorder %s15, 0
      %p52 = por %p50, %p51
      %p53 = scmp.ne.s32.totalorder %s41, %s42
      %p54 = scmp.eq.s32.totalorder %s16, 1
      %p55 = por %p53, %p54
      %p57 = scmp.ne.s32.totalorder %s42, %s56
      %p58 = scmp.eq.s32.totalorder %s16, 0
      %p59 = por %p57, %p58
      %s60 = ssub.s32 %s10, %s17
      %p61 = scmp.eq.s32.totalorder %s60, 0
      %s63 = sadd.s32 %s62, 1
      %s64 = scalar_select %p61, %s62, %s63
      %p67 = pneg %p61
      %p68 = scmp.eq.s32.totalorder %s10, 1
      %p69 = por %p67, %p68
      %p70 = scmp.ne.s32.totalorder %s62, %s65
      %p71 = scmp.eq.s32.totalorder %s10, 0
      %p72 = por %p70, %p71
      %p73 = scmp.ne.s32.totalorder %s62, %s65
      %p74 = scmp.eq.s32.totalorder %s15, 1
      %p75 = por %p73, %p74
      %p76 = scmp.ne.s32.totalorder %s65, %s66
      %p77 = scmp.eq.s32.totalorder %s15, 0
      %p78 = por %p76, %p77
      %p79 = scmp.ne.s32.totalorder %s65, %s66
      %p80 = scmp.eq.s32.totalorder %s16, 1
      %p81 = por %p79, %p80
      %p83 = scmp.ne.s32.totalorder %s66, %s82
      %p84 = scmp.eq.s32.totalorder %s16, 0
      %p85 = por %p83, %p84
      %s86 = ssub.s32 %s10, %s17
      %p87 = scmp.eq.s32.totalorder %s86, 0
      %s89 = sadd.s32 %s88, 1
      %s90 = scalar_select %p87, %s88, %s89
      %p93 = pneg %p87
      %p94 = scmp.eq.s32.totalorder %s10, 1
      %p95 = por %p93, %p94
      %p96 = scmp.ne.s32.totalorder %s88, %s91
      %p97 = scmp.eq.s32.totalorder %s10, 0
      %p98 = por %p96, %p97
      %p99 = scmp.ne.s32.totalorder %s88, %s91
      %p100 = scmp.eq.s32.totalorder %s15, 1
      %p101 = por %p99, %p100
      %p102 = scmp.ne.s32.totalorder %s91, %s92
      %p103 = scmp.eq.s32.totalorder %s15, 0
      %p104 = por %p102, %p103
      %p105 = scmp.ne.s32.totalorder %s91, %s92
      %p106 = scmp.eq.s32.totalorder %s16, 1
      %p107 = por %p105, %p106
      %p109 = scmp.ne.s32.totalorder %s92, %s108
      %p110 = scmp.eq.s32.totalorder %s16, 0
      %p111 = por %p109, %p110
      %p112 = scmp.le.s32.totalorder 1, %s10
      %p113 = scmp.lt.s32.totalorder %s10, 3
      %p114 = pnand %p112, %p113
      %p115 = pneg %p114
      // Predicated region
      $region9: #{tpu_custom_call.1} parent=5 // pred_check
        _
      $region10: #{tpu_custom_call.1} parent=5 // pred_check_branch
        %117 = sbr.rel (%p114) target = $region12
      $region11: #{tpu_custom_call.1} parent=5 // pred_region
        %s118 = ssub.s32 %s10, 1
        // Predicated region
        $region13: #{tpu_custom_call.1} parent=11 // pred_check
          %p119 = pneg %p31
        $region14: #{tpu_custom_call.1} parent=11 // pred_check_branch
          %121 = sbr.rel (%p119) target = $region16
        $region15: #{tpu_custom_call.1} parent=11 // pred_region
          %s123 = ssub.s32 64, 64
          %124 = vsyncadd [#allocation4], %s123
          %s126 = sshll.u32 %s0, 4
          %s127 = int_to_ptr.vmem [resolvable:$true] %s126
          %129 = dma.vmem_to_smem %s127, 64, [#allocation3], [#allocation4]
        $region16: #{tpu_custom_call.1} parent=11 // pred_fallthru
          _
        // Predicated region
        $region17: #{tpu_custom_call.1} parent=11 // pred_check
          %p130 = pneg %p52
        $region18: #{tpu_custom_call.1} parent=11 // pred_check_branch
          %132 = sbr.rel (%p130) target = $region20
        $region19: #{tpu_custom_call.1} parent=11 // pred_region
          _
        $region20: #{tpu_custom_call.1} parent=11 // pred_fallthru
          _
      $region12: #{tpu_custom_call.1} parent=5 // pred_fallthru
        _
      %p133 = scmp.lt.s32.totalorder %s10, 2
      // Predicated region
      $region21: #{tpu_custom_call.1} parent=5 // pred_check
        %p134 = pneg %p133
      $region22: #{tpu_custom_call.1} parent=5 // pred_check_branch
        %136 = sbr.rel (%p134) target = $region24
      $region23: #{tpu_custom_call.1} parent=5 // pred_region
        // Predicated region
        $region25: #{tpu_custom_call.1} parent=23 // pred_check
          %p137 = pneg %p72
        $region26: #{tpu_custom_call.1} parent=23 // pred_check_branch
          %139 = sbr.rel (%p137) target = $region28
        $region27: #{tpu_custom_call.1} parent=23 // pred_region
          %p140 = scmp.lt.s32.totalorder %s10, 1
          %s141 = scalar_select %p140, %s10, 1
          %s142 = smul.addr %s141, 6
          %s143 = smul.addr %s142, 8
          %s144 = scalar_lea.vmem %s2, %s143
        $region28: #{tpu_custom_call.1} parent=23 // pred_fallthru
          _
      $region24: #{tpu_custom_call.1} parent=5 // pred_fallthru
        _
      %p145 = scmp.le.s32.totalorder 1, %s10
      %p146 = scmp.lt.s32.totalorder %s10, 3
      %p147 = pnand %p145, %p146
      %p148 = pneg %p147
      // Predicated region
      $region29: #{tpu_custom_call.1} parent=5 // pred_check
        _
      $region30: #{tpu_custom_call.1} parent=5 // pred_check_branch
        %150 = sbr.rel (%p147) target = $region32
      $region31: #{tpu_custom_call.1} parent=5 // pred_region
        %s151 = ssub.s32 %s10, 1
        // Predicated region
        $region33: #{tpu_custom_call.1} parent=31 // pred_check
          %p152 = pneg %p31
        $region34: #{tpu_custom_call.1} parent=31 // pred_check_branch
          %154 = sbr.rel (%p152) target = $region36
        $region35: #{tpu_custom_call.1} parent=31 // pred_region
          %155 = dma.done [#allocation4], 64
        $region36: #{tpu_custom_call.1} parent=31 // pred_fallthru
          _
        %156 = sfence
        %p157 = pneg %p31
        %p158 = pneg %p28
        %p159 = pneg %p52
        %p160 = pneg %p49
        %p161 = scmp.lt.s32.totalorder %s15, 1
        %s162 = scalar_select %p161, %s15, 1
        %s163 = smul.addr %s162, 6
        %s164 = smul.addr %s163, 8
        %s165 = scalar_lea.vmem %s2, %s164
        %p166 = pneg %p78
        %p167 = pneg %p75
        %p168 = pneg %p104
        %p169 = pneg %p101
        %p170 = scmp.lt.s32.totalorder %s15, 1
        %s171 = scalar_select %p170, %s15, 1
        %s172 = smul.addr %s171, 96
        %s173 = smul.addr %s172, 8
        %s174 = scalar_lea.vmem %s3, %s173
        %p175 = scmp.lt.s32.totalorder %s15, 1
        %s176 = scalar_select %p175, %s15, 1
        %s177 = smul.addr %s176, 6
        %s178 = smul.addr %s177, 8
        %s179 = scalar_lea.vmem %s2, %s178
        %p180 = scmp.lt.s32.totalorder %s15, 1
        %s181 = scalar_select %p180, %s15, 1
        %s182 = smul.addr %s181, 96
        %s183 = smul.addr %s182, 8
        %s184 = scalar_lea.vmem %s3, %s183
        %v185 = vld [vmem:[%s1] sm:$0xf]
        %v186 = vlaneseq
        %vm187 = vcmp.ge.s32.totalorder %v186, 0
        %vm188 = vcmp.lt.s32.totalorder %v186, 256
        %vm189 = vmand %vm187, %vm188
        %s190 = scalar_lea.vmem [#allocation2], 7
        %191 = vst.msk [vmem:[%s190] ss:$8 sm:$0x3] %vm189, 0.0
        %192 = vst.msk [vmem:[%s190] ss:$8 sm:$0x0] %vm189, 0.0
        %v193 = vld [vmem:[%s179] sm:$0x7f]
        %v194 = vld [vmem:[%s179 + $0x8] sm:$0x7f]
        %v195 = vxor.u32 %v193, 2147483648
        %v196 = vxor.u32 %v194, 2147483648
        %v197 = vmul.f32 %v195, 1.442695
        %v198 = vpow.pop %v197
        %v199 = vmul.f32 %v196, 1.442695
        %v200 = vpow.pop %v199
        %v201 = vadd.f32 %v198, 1.0
        %v202 = vadd.f32 %v200, 1.0
        %v203 = vrcp.pop %v201
        %v204 = vmul.f32 1.0, %v203
        %v205 = vrcp.pop %v202
        %v206 = vmul.f32 1.0, %v205
        %v209 = vunpack.c.l.s4 1983009808
        %v210 = vunpack.c.0.s8 %v209
        %v211 = vlaneseq
        %v212 = vshrl.u32 %v211, 7
        %v213 = vsub.s32 %v210, %v212
        %v214 = vrot.slane %v185, %v213
        %v215 = vcombine.high %v214, %v214
        %v218 = vadd.f32 %v204, %v214
        %v219 = vadd.f32 %v206, %v215
        %v220 = vmul.f32 %v218, 4.0
        %v221 = vmul.f32 %v219, 4.0
        %222 = vst [vmem:[#allocation2] sm:$0x3] %v220
        %223 = vst [vmem:[#allocation2 + $0x8] sm:$0x3] %v221
        %v224 = vmul.f32 %v193, 1.442695
        %v225 = vpow.pop %v224
        %v226 = vmul.f32 %v194, 1.442695
        %v227 = vpow.pop %v226
        %s228 = sld [smem:[#allocation3]]
        %v229 = vstv %s228
        %v230 = vmul.f32 %v225, %v229
        %v231 = vmul.f32 %v227, %v229
        %v234 = vcombine.low %v230, %v231
        %v236 = vunpack.c.l.s4 1966171168
        %v237 = vunpack.c.0.s8 %v236
        %v238 = vlaneseq
        %v239 = vshrl.u32 %v238, 7
        %v240 = vsub.s32 %v237, %v239
        %v241 = vrot.slane %v234, %v240
        %v243 = vunpack.c.l.s4 1966171168
        %v244 = vunpack.c.0.s8 %v243
        %v245 = vlaneseq
        %v246 = vshrl.u32 %v245, 7
        %v247 = vsub.s32 %v244, %v246
        %v248 = vrot.slane %v241, %v247
        %v249 = vcombine.high %v248, %v248
        %s251 = scalar_lea.vmem [#allocation2], 2
        %252 = vst.msk [vmem:[%s251] ss:$8 sm:$0x3] %vm189, %v249
        %253 = vst.msk [vmem:[%s251] ss:$8 sm:$0x0] %vm189, %v249
        %s254 = sld [smem:[#allocation3 + $0x1]]
        %v255 = vstv %s254
        %v256 = vmul.f32 %v225, %v255
        %v257 = vmul.f32 %v227, %v255
        %v260 = vcombine.low %v256, %v257
        %v262 = vunpack.c.l.s4 1966171168
        %v263 = vunpack.c.0.s8 %v262
        %v264 = vlaneseq
        %v265 = vshrl.u32 %v264, 7
        %v266 = vsub.s32 %v263, %v265
        %v267 = vrot.slane %v260, %v266
        %v268 = vcombine.high %v267, %v267
        %v270 = vunpack.c.l.s4 1966171168
        %v271 = vunpack.c.0.s8 %v270
        %v272 = vlaneseq
        %v273 = vshrl.u32 %v272, 7
        %v274 = vsub.s32 %v271, %v273
        %v275 = vrot.slane %v268, %v274
        %v276 = vcombine.high %v275, %v275
        %s278 = scalar_lea.vmem [#allocation2], 3
        %279 = vst.msk [vmem:[%s278] ss:$8 sm:$0x3] %vm189, %v276
        %280 = vst.msk [vmem:[%s278] ss:$8 sm:$0x0] %vm189, %v276
        %281 = vst [vmem:[#allocation2] sm:$0x70] %v204
        %282 = vst [vmem:[#allocation2 + $0x8] sm:$0x70] %v206
        %v283 = vld [vmem:[#allocation2] sm:$0xff]
        %v284 = vld [vmem:[#allocation2 + $0x8] sm:$0xff]
        %285 = vxpose.xlu0.b32.start [1/16] %v283, 128
        %286 = vxpose.xlu0.b32.cont [2/16] 0.0, 128
        %287 = vxpose.xlu0.b32.cont [3/16] 0.0, 128
        %288 = vxpose.xlu0.b32.cont [4/16] 0.0, 128
        %289 = vxpose.xlu0.b32.cont [5/16] 0.0, 128
        %290 = vxpose.xlu0.b32.cont [6/16] 0.0, 128
        %291 = vxpose.xlu0.b32.cont [7/16] 0.0, 128
        %292 = vxpose.xlu0.b32.cont [8/16] 0.0, 128
        %293 = vxpose.xlu0.b32.cont [9/16] 0.0, 128
        %294 = vxpose.xlu0.b32.cont [10/16] 0.0, 128
        %295 = vxpose.xlu0.b32.cont [11/16] 0.0, 128
        %296 = vxpose.xlu0.b32.cont [12/16] 0.0, 128
        %297 = vxpose.xlu0.b32.cont [13/16] 0.0, 128
        %298 = vxpose.xlu0.b32.cont [14/16] 0.0, 128
        %299 = vxpose.xlu0.b32.cont [15/16] 0.0, 128
        %300 = vxpose.xlu0.b32.end [16/16] 0.0, 128
        %v301 = vpop.trf.xlu0
        %v302 = vpop.trf.xlu0
        %v303 = vpop.trf.xlu0
        %v304 = vpop.trf.xlu0
        %v305 = vpop.trf.xlu0
        %v306 = vpop.trf.xlu0
        %v307 = vpop.trf.xlu0
        %v308 = vpop.trf.xlu0
        %v309 = vpop.trf.xlu0
        %v310 = vpop.trf.xlu0
        %v311 = vpop.trf.xlu0
        %v312 = vpop.trf.xlu0
        %v313 = vpop.trf.xlu0
        %v314 = vpop.trf.xlu0
        %v315 = vpop.trf.xlu0
        %v316 = vpop.trf.xlu0
        %317 = vxpose.xlu0.b32.start [1/16] %v284, 128
        %318 = vxpose.xlu0.b32.cont [2/16] 0.0, 128
        %319 = vxpose.xlu0.b32.cont [3/16] 0.0, 128
        %320 = vxpose.xlu0.b32.cont [4/16] 0.0, 128
        %321 = vxpose.xlu0.b32.cont [5/16] 0.0, 128
        %322 = vxpose.xlu0.b32.cont [6/16] 0.0, 128
        %323 = vxpose.xlu0.b32.cont [7/16] 0.0, 128
        %324 = vxpose.xlu0.b32.cont [8/16] 0.0, 128
        %325 = vxpose.xlu0.b32.cont [9/16] 0.0, 128
        %326 = vxpose.xlu0.b32.cont [10/16] 0.0, 128
        %327 = vxpose.xlu0.b32.cont [11/16] 0.0, 128
        %328 = vxpose.xlu0.b32.cont [12/16] 0.0, 128
        %329 = vxpose.xlu0.b32.cont [13/16] 0.0, 128
        %330 = vxpose.xlu0.b32.cont [14/16] 0.0, 128
        %331 = vxpose.xlu0.b32.cont [15/16] 0.0, 128
        %332 = vxpose.xlu0.b32.end [16/16] 0.0, 128
        %v333 = vpop.trf.xlu0
        %v334 = vpop.trf.xlu0
        %v335 = vpop.trf.xlu0
        %v336 = vpop.trf.xlu0
        %v337 = vpop.trf.xlu0
        %v338 = vpop.trf.xlu0
        %v339 = vpop.trf.xlu0
        %v340 = vpop.trf.xlu0
        %v341 = vpop.trf.xlu0
        %v342 = vpop.trf.xlu0
        %v343 = vpop.trf.xlu0
        %v344 = vpop.trf.xlu0
        %v345 = vpop.trf.xlu0
        %v346 = vpop.trf.xlu0
        %v347 = vpop.trf.xlu0
        %v348 = vpop.trf.xlu0
        %vm349 = vcmask 56320
        %350 = vst.msk [vmem:[%s184] sm:$0xff] %vm349, %v301
        %351 = vst.msk [vmem:[%s184 + $0x8] sm:$0xff] %vm349, %v302
        %352 = vst.msk [vmem:[%s184 + $0x10] sm:$0xff] %vm349, %v303
        %353 = vst.msk [vmem:[%s184 + $0x18] sm:$0xff] %vm349, %v304
        %354 = vst.msk [vmem:[%s184 + $0x20] sm:$0xff] %vm349, %v305
        %355 = vst.msk [vmem:[%s184 + $0x28] sm:$0xff] %vm349, %v306
        %356 = vst.msk [vmem:[%s184 + $0x30] sm:$0xff] %vm349, %v307
        %357 = vst.msk [vmem:[%s184 + $0x38] sm:$0xff] %vm349, %v308
        %358 = vst.msk [vmem:[%s184 + $0x40] sm:$0xff] %vm349, %v309
        %359 = vst.msk [vmem:[%s184 + $0x48] sm:$0xff] %vm349, %v310
        %360 = vst.msk [vmem:[%s184 + $0x50] sm:$0xff] %vm349, %v311
        %361 = vst.msk [vmem:[%s184 + $0x58] sm:$0xff] %vm349, %v312
        %362 = vst.msk [vmem:[%s184 + $0x60] sm:$0xff] %vm349, %v313
        %363 = vst.msk [vmem:[%s184 + $0x68] sm:$0xff] %vm349, %v314
        %364 = vst.msk [vmem:[%s184 + $0x70] sm:$0xff] %vm349, %v315
        %365 = vst.msk [vmem:[%s184 + $0x78] sm:$0xff] %vm349, %v316
        %366 = vst.msk [vmem:[%s184 + $0x80] sm:$0xff] %vm349, %v333
        %367 = vst.msk [vmem:[%s184 + $0x88] sm:$0xff] %vm349, %v334
        %368 = vst.msk [vmem:[%s184 + $0x90] sm:$0xff] %vm349, %v335
        %369 = vst.msk [vmem:[%s184 + $0x98] sm:$0xff] %vm349, %v336
        %370 = vst.msk [vmem:[%s184 + $0xa0] sm:$0xff] %vm349, %v337
        %371 = vst.msk [vmem:[%s184 + $0xa8] sm:$0xff] %vm349, %v338
        %372 = vst.msk [vmem:[%s184 + $0xb0] sm:$0xff] %vm349, %v339
        %373 = vst.msk [vmem:[%s184 + $0xb8] sm:$0xff] %vm349, %v340
        %374 = vst.msk [vmem:[%s184 + $0xc0] sm:$0xff] %vm349, %v341
        %375 = vst.msk [vmem:[%s184 + $0xc8] sm:$0xff] %vm349, %v342
        %376 = vst.msk [vmem:[%s184 + $0xd0] sm:$0xff] %vm349, %v343
        %377 = vst.msk [vmem:[%s184 + $0xd8] sm:$0xff] %vm349, %v344
        %378 = vst.msk [vmem:[%s184 + $0xe0] sm:$0xff] %vm349, %v345
        %379 = vst.msk [vmem:[%s184 + $0xe8] sm:$0xff] %vm349, %v346
        %380 = vst.msk [vmem:[%s184 + $0xf0] sm:$0xff] %vm349, %v347
        %381 = vst.msk [vmem:[%s184 + $0xf8] sm:$0xff] %vm349, %v348
        %s382 = scalar_lea.vmem %s179, 16
        %v383 = vld [vmem:[%s382] sm:$0x7f]
        %v384 = vld [vmem:[%s382 + $0x8] sm:$0x7f]
        %v385 = vxor.u32 %v383, 2147483648
        %v386 = vxor.u32 %v384, 2147483648
        %v387 = vmul.f32 %v385, 1.442695
        %v388 = vpow.pop %v387
        %v389 = vmul.f32 %v386, 1.442695
        %v390 = vpow.pop %v389
        %v391 = vadd.f32 %v388, 1.0
        %v392 = vadd.f32 %v390, 1.0
        %v393 = vrcp.pop %v391
        %v394 = vmul.f32 1.0, %v393
        %v395 = vrcp.pop %v392
        %v396 = vmul.f32 1.0, %v395
        %v397 = vadd.f32 %v394, %v214
        %v398 = vadd.f32 %v396, %v215
        %v399 = vmul.f32 %v397, 4.0
        %v400 = vmul.f32 %v398, 4.0
        %401 = vst [vmem:[#allocation2] sm:$0x3] %v399
        %402 = vst [vmem:[#allocation2 + $0x8] sm:$0x3] %v400
        %v403 = vmul.f32 %v383, 1.442695
        %v404 = vpow.pop %v403
        %v405 = vmul.f32 %v384, 1.442695
        %v406 = vpow.pop %v405
        %s407 = sld [smem:[#allocation3 + $0x80]]
        %v408 = vstv %s407
        %v409 = vmul.f32 %v404, %v408
        %v410 = vmul.f32 %v406, %v408
        %v413 = vcombine.low %v409, %v410
        %v415 = vunpack.c.l.s4 1966171168
        %v416 = vunpack.c.0.s8 %v415
        %v417 = vlaneseq
        %v418 = vshrl.u32 %v417, 7
        %v419 = vsub.s32 %v416, %v418
        %v420 = vrot.slane %v413, %v419
        %v422 = vunpack.c.l.s4 1966171168
        %v423 = vunpack.c.0.s8 %v422
        %v424 = vlaneseq
        %v425 = vshrl.u32 %v424, 7
        %v426 = vsub.s32 %v423, %v425
        %v427 = vrot.slane %v420, %v426
        %v428 = vcombine.high %v427, %v427
        %430 = vst.msk [vmem:[%s251] ss:$8 sm:$0x3] %vm189, %v428
        %431 = vst.msk [vmem:[%s251] ss:$8 sm:$0x0] %vm189, %v428
        %s432 = sld [smem:[#allocation3 + $0x81]]
        %v433 = vstv %s432
        %v434 = vmul.f32 %v404, %v433
        %v435 = vmul.f32 %v406, %v433
        %v438 = vcombine.low %v434, %v435
        %v440 = vunpack.c.l.s4 1966171168
        %v441 = vunpack.c.0.s8 %v440
        %v442 = vlaneseq
        %v443 = vshrl.u32 %v442, 7
        %v444 = vsub.s32 %v441, %v443
        %v445 = vrot.slane %v438, %v444
        %v446 = vcombine.high %v445, %v445
        %v448 = vunpack.c.l.s4 1966171168
        %v449 = vunpack.c.0.s8 %v448
        %v450 = vlaneseq
        %v451 = vshrl.u32 %v450, 7
        %v452 = vsub.s32 %v449, %v451
        %v453 = vrot.slane %v446, %v452
        %v454 = vcombine.high %v453, %v453
        %456 = vst.msk [vmem:[%s278] ss:$8 sm:$0x3] %vm189, %v454
        %457 = vst.msk [vmem:[%s278] ss:$8 sm:$0x0] %vm189, %v454
        %458 = vst [vmem:[#allocation2] sm:$0x70] %v394
        %459 = vst [vmem:[#allocation2 + $0x8] sm:$0x70] %v396
        %v460 = vld [vmem:[#allocation2] sm:$0xff]
        %v461 = vld [vmem:[#allocation2 + $0x8] sm:$0xff]
        %462 = vxpose.xlu0.b32.start [1/16] %v460, 128
        %463 = vxpose.xlu0.b32.cont [2/16] 0.0, 128
        %464 = vxpose.xlu0.b32.cont [3/16] 0.0, 128
        %465 = vxpose.xlu0.b32.cont [4/16] 0.0, 128
        %466 = vxpose.xlu0.b32.cont [5/16] 0.0, 128
        %467 = vxpose.xlu0.b32.cont [6/16] 0.0, 128
        %468 = vxpose.xlu0.b32.cont [7/16] 0.0, 128
        %469 = vxpose.xlu0.b32.cont [8/16] 0.0, 128
        %470 = vxpose.xlu0.b32.cont [9/16] 0.0, 128
        %471 = vxpose.xlu0.b32.cont [10/16] 0.0, 128
        %472 = vxpose.xlu0.b32.cont [11/16] 0.0, 128
        %473 = vxpose.xlu0.b32.cont [12/16] 0.0, 128
        %474 = vxpose.xlu0.b32.cont [13/16] 0.0, 128
        %475 = vxpose.xlu0.b32.cont [14/16] 0.0, 128
        %476 = vxpose.xlu0.b32.cont [15/16] 0.0, 128
        %477 = vxpose.xlu0.b32.end [16/16] 0.0, 128
        %v478 = vpop.trf.xlu0
        %v479 = vpop.trf.xlu0
        %v480 = vpop.trf.xlu0
        %v481 = vpop.trf.xlu0
        %v482 = vpop.trf.xlu0
        %v483 = vpop.trf.xlu0
        %v484 = vpop.trf.xlu0
        %v485 = vpop.trf.xlu0
        %v486 = vpop.trf.xlu0
        %v487 = vpop.trf.xlu0
        %v488 = vpop.trf.xlu0
        %v489 = vpop.trf.xlu0
        %v490 = vpop.trf.xlu0
        %v491 = vpop.trf.xlu0
        %v492 = vpop.trf.xlu0
        %v493 = vpop.trf.xlu0
        %494 = vxpose.xlu0.b32.start [1/16] %v461, 128
        %495 = vxpose.xlu0.b32.cont [2/16] 0.0, 128
        %496 = vxpose.xlu0.b32.cont [3/16] 0.0, 128
        %497 = vxpose.xlu0.b32.cont [4/16] 0.0, 128
        %498 = vxpose.xlu0.b32.cont [5/16] 0.0, 128
        %499 = vxpose.xlu0.b32.cont [6/16] 0.0, 128
        %500 = vxpose.xlu0.b32.cont [7/16] 0.0, 128
        %501 = vxpose.xlu0.b32.cont [8/16] 0.0, 128
        %502 = vxpose.xlu0.b32.cont [9/16] 0.0, 128
        %503 = vxpose.xlu0.b32.cont [10/16] 0.0, 128
        %504 = vxpose.xlu0.b32.cont [11/16] 0.0, 128
        %505 = vxpose.xlu0.b32.cont [12/16] 0.0, 128
        %506 = vxpose.xlu0.b32.cont [13/16] 0.0, 128
        %507 = vxpose.xlu0.b32.cont [14/16] 0.0, 128
        %508 = vxpose.xlu0.b32.cont [15/16] 0.0, 128
        %509 = vxpose.xlu0.b32.end [16/16] 0.0, 128
        %v510 = vpop.trf.xlu0
        %v511 = vpop.trf.xlu0
        %v512 = vpop.trf.xlu0
        %v513 = vpop.trf.xlu0
        %v514 = vpop.trf.xlu0
        %v515 = vpop.trf.xlu0
        %v516 = vpop.trf.xlu0
        %v517 = vpop.trf.xlu0
        %v518 = vpop.trf.xlu0
        %v519 = vpop.trf.xlu0
        %v520 = vpop.trf.xlu0
        %v521 = vpop.trf.xlu0
        %v522 = vpop.trf.xlu0
        %v523 = vpop.trf.xlu0
        %v524 = vpop.trf.xlu0
        %v525 = vpop.trf.xlu0
        %s526 = scalar_lea.vmem %s184, 256
        %527 = vst.msk [vmem:[%s526] sm:$0xff] %vm349, %v478
        %528 = vst.msk [vmem:[%s526 + $0x8] sm:$0xff] %vm349, %v479
        %529 = vst.msk [vmem:[%s526 + $0x10] sm:$0xff] %vm349, %v480
        %530 = vst.msk [vmem:[%s526 + $0x18] sm:$0xff] %vm349, %v481
        %531 = vst.msk [vmem:[%s526 + $0x20] sm:$0xff] %vm349, %v482
        %532 = vst.msk [vmem:[%s526 + $0x28] sm:$0xff] %vm349, %v483
        %533 = vst.msk [vmem:[%s526 + $0x30] sm:$0xff] %vm349, %v484
        %534 = vst.msk [vmem:[%s526 + $0x38] sm:$0xff] %vm349, %v485
        %535 = vst.msk [vmem:[%s526 + $0x40] sm:$0xff] %vm349, %v486
        %536 = vst.msk [vmem:[%s526 + $0x48] sm:$0xff] %vm349, %v487
        %537 = vst.msk [vmem:[%s526 + $0x50] sm:$0xff] %vm349, %v488
        %538 = vst.msk [vmem:[%s526 + $0x58] sm:$0xff] %vm349, %v489
        %539 = vst.msk [vmem:[%s526 + $0x60] sm:$0xff] %vm349, %v490
        %540 = vst.msk [vmem:[%s526 + $0x68] sm:$0xff] %vm349, %v491
        %541 = vst.msk [vmem:[%s526 + $0x70] sm:$0xff] %vm349, %v492
        %542 = vst.msk [vmem:[%s526 + $0x78] sm:$0xff] %vm349, %v493
        %543 = vst.msk [vmem:[%s526 + $0x80] sm:$0xff] %vm349, %v510
        %544 = vst.msk [vmem:[%s526 + $0x88] sm:$0xff] %vm349, %v511
        %545 = vst.msk [vmem:[%s526 + $0x90] sm:$0xff] %vm349, %v512
        %546 = vst.msk [vmem:[%s526 + $0x98] sm:$0xff] %vm349, %v513
        %547 = vst.msk [vmem:[%s526 + $0xa0] sm:$0xff] %vm349, %v514
        %548 = vst.msk [vmem:[%s526 + $0xa8] sm:$0xff] %vm349, %v515
        %549 = vst.msk [vmem:[%s526 + $0xb0] sm:$0xff] %vm349, %v516
        %550 = vst.msk [vmem:[%s526 + $0xb8] sm:$0xff] %vm349, %v517
        %551 = vst.msk [vmem:[%s526 + $0xc0] sm:$0xff] %vm349, %v518
        %552 = vst.msk [vmem:[%s526 + $0xc8] sm:$0xff] %vm349, %v519
        %553 = vst.msk [vmem:[%s526 + $0xd0] sm:$0xff] %vm349, %v520
        %554 = vst.msk [vmem:[%s526 + $0xd8] sm:$0xff] %vm349, %v521
        %555 = vst.msk [vmem:[%s526 + $0xe0] sm:$0xff] %vm349, %v522
        %556 = vst.msk [vmem:[%s526 + $0xe8] sm:$0xff] %vm349, %v523
        %557 = vst.msk [vmem:[%s526 + $0xf0] sm:$0xff] %vm349, %v524
        %558 = vst.msk [vmem:[%s526 + $0xf8] sm:$0xff] %vm349, %v525
        %s559 = scalar_lea.vmem %s179, 32
        %v560 = vld [vmem:[%s559] sm:$0x7f]
        %v561 = vld [vmem:[%s559 + $0x8] sm:$0x7f]
        %v562 = vxor.u32 %v560, 2147483648
        %v563 = vxor.u32 %v561, 2147483648
        %v564 = vmul.f32 %v562, 1.442695
        %v565 = vpow.pop %v564
        %v566 = vmul.f32 %v563, 1.442695
        %v567 = vpow.pop %v566
        %v568 = vadd.f32 %v565, 1.0
        %v569 = vadd.f32 %v567, 1.0
        %v570 = vrcp.pop %v568
        %v571 = vmul.f32 1.0, %v570
        %v572 = vrcp.pop %v569
        %v573 = vmul.f32 1.0, %v572
        %v574 = vadd.f32 %v571, %v214
        %v575 = vadd.f32 %v573, %v215
        %v576 = vmul.f32 %v574, 4.0
        %v577 = vmul.f32 %v575, 4.0
        %578 = vst [vmem:[#allocation2] sm:$0x3] %v576
        %579 = vst [vmem:[#allocation2 + $0x8] sm:$0x3] %v577
        %v580 = vmul.f32 %v560, 1.442695
        %v581 = vpow.pop %v580
        %v582 = vmul.f32 %v561, 1.442695
        %v583 = vpow.pop %v582
        %s584 = sld [smem:[#allocation3 + $0x100]]
        %v585 = vstv %s584
        %v586 = vmul.f32 %v581, %v585
        %v587 = vmul.f32 %v583, %v585
        %v590 = vcombine.low %v586, %v587
        %v592 = vunpack.c.l.s4 1966171168
        %v593 = vunpack.c.0.s8 %v592
        %v594 = vlaneseq
        %v595 = vshrl.u32 %v594, 7
        %v596 = vsub.s32 %v593, %v595
        %v597 = vrot.slane %v590, %v596
        %v599 = vunpack.c.l.s4 1966171168
        %v600 = vunpack.c.0.s8 %v599
        %v601 = vlaneseq
        %v602 = vshrl.u32 %v601, 7
        %v603 = vsub.s32 %v600, %v602
        %v604 = vrot.slane %v597, %v603
        %v605 = vcombine.high %v604, %v604
        %607 = vst.msk [vmem:[%s251] ss:$8 sm:$0x3] %vm189, %v605
        %608 = vst.msk [vmem:[%s251] ss:$8 sm:$0x0] %vm189, %v605
        %s609 = sld [smem:[#allocation3 + $0x101]]
        %v610 = vstv %s609
        %v611 = vmul.f32 %v581, %v610
        %v612 = vmul.f32 %v583, %v610
        %v615 = vcombine.low %v611, %v612
        %v617 = vunpack.c.l.s4 1966171168
        %v618 = vunpack.c.0.s8 %v617
        %v619 = vlaneseq
        %v620 = vshrl.u32 %v619, 7
        %v621 = vsub.s32 %v618, %v620
        %v622 = vrot.slane %v615, %v621
        %v623 = vcombine.high %v622, %v622
        %v625 = vunpack.c.l.s4 1966171168
        %v626 = vunpack.c.0.s8 %v625
        %v627 = vlaneseq
        %v628 = vshrl.u32 %v627, 7
        %v629 = vsub.s32 %v626, %v628
        %v630 = vrot.slane %v623, %v629
        %v631 = vcombine.high %v630, %v630
        %633 = vst.msk [vmem:[%s278] ss:$8 sm:$0x3] %vm189, %v631
        %634 = vst.msk [vmem:[%s278] ss:$8 sm:$0x0] %vm189, %v631
        %635 = vst [vmem:[#allocation2] sm:$0x70] %v571
        %636 = vst [vmem:[#allocation2 + $0x8] sm:$0x70] %v573
        %v637 = vld [vmem:[#allocation2] sm:$0xff]
        %v638 = vld [vmem:[#allocation2 + $0x8] sm:$0xff]
        %639 = vxpose.xlu0.b32.start [1/16] %v637, 128
        %640 = vxpose.xlu0.b32.cont [2/16] 0.0, 128
        %641 = vxpose.xlu0.b32.cont [3/16] 0.0, 128
        %642 = vxpose.xlu0.b32.cont [4/16] 0.0, 128
        %643 = vxpose.xlu0.b32.cont [5/16] 0.0, 128
        %644 = vxpose.xlu0.b32.cont [6/16] 0.0, 128
        %645 = vxpose.xlu0.b32.cont [7/16] 0.0, 128
        %646 = vxpose.xlu0.b32.cont [8/16] 0.0, 128
        %647 = vxpose.xlu0.b32.cont [9/16] 0.0, 128
        %648 = vxpose.xlu0.b32.cont [10/16] 0.0, 128
        %649 = vxpose.xlu0.b32.cont [11/16] 0.0, 128
        %650 = vxpose.xlu0.b32.cont [12/16] 0.0, 128
        %651 = vxpose.xlu0.b32.cont [13/16] 0.0, 128
        %652 = vxpose.xlu0.b32.cont [14/16] 0.0, 128
        %653 = vxpose.xlu0.b32.cont [15/16] 0.0, 128
        %654 = vxpose.xlu0.b32.end [16/16] 0.0, 128
        %v655 = vpop.trf.xlu0
        %v656 = vpop.trf.xlu0
        %v657 = vpop.trf.xlu0
        %v658 = vpop.trf.xlu0
        %v659 = vpop.trf.xlu0
        %v660 = vpop.trf.xlu0
        %v661 = vpop.trf.xlu0
        %v662 = vpop.trf.xlu0
        %v663 = vpop.trf.xlu0
        %v664 = vpop.trf.xlu0
        %v665 = vpop.trf.xlu0
        %v666 = vpop.trf.xlu0
        %v667 = vpop.trf.xlu0
        %v668 = vpop.trf.xlu0
        %v669 = vpop.trf.xlu0
        %v670 = vpop.trf.xlu0
        %671 = vxpose.xlu0.b32.start [1/16] %v638, 128
        %672 = vxpose.xlu0.b32.cont [2/16] 0.0, 128
        %673 = vxpose.xlu0.b32.cont [3/16] 0.0, 128
        %674 = vxpose.xlu0.b32.cont [4/16] 0.0, 128
        %675 = vxpose.xlu0.b32.cont [5/16] 0.0, 128
        %676 = vxpose.xlu0.b32.cont [6/16] 0.0, 128
        %677 = vxpose.xlu0.b32.cont [7/16] 0.0, 128
        %678 = vxpose.xlu0.b32.cont [8/16] 0.0, 128
        %679 = vxpose.xlu0.b32.cont [9/16] 0.0, 128
        %680 = vxpose.xlu0.b32.cont [10/16] 0.0, 128
        %681 = vxpose.xlu0.b32.cont [11/16] 0.0, 128
        %682 = vxpose.xlu0.b32.cont [12/16] 0.0, 128
        %683 = vxpose.xlu0.b32.cont [13/16] 0.0, 128
        %684 = vxpose.xlu0.b32.cont [14/16] 0.0, 128
        %685 = vxpose.xlu0.b32.cont [15/16] 0.0, 128
        %686 = vxpose.xlu0.b32.end [16/16] 0.0, 128
        %v687 = vpop.trf.xlu0
        %v688 = vpop.trf.xlu0
        %v689 = vpop.trf.xlu0
        %v690 = vpop.trf.xlu0
        %v691 = vpop.trf.xlu0
        %v692 = vpop.trf.xlu0
        %v693 = vpop.trf.xlu0
        %v694 = vpop.trf.xlu0
        %v695 = vpop.trf.xlu0
        %v696 = vpop.trf.xlu0
        %v697 = vpop.trf.xlu0
        %v698 = vpop.trf.xlu0
        %v699 = vpop.trf.xlu0
        %v700 = vpop.trf.xlu0
        %v701 = vpop.trf.xlu0
        %v702 = vpop.trf.xlu0
        %s703 = scalar_lea.vmem %s184, 512
        %704 = vst.msk [vmem:[%s703] sm:$0xff] %vm349, %v655
        %705 = vst.msk [vmem:[%s703 + $0x8] sm:$0xff] %vm349, %v656
        %706 = vst.msk [vmem:[%s703 + $0x10] sm:$0xff] %vm349, %v657
        %707 = vst.msk [vmem:[%s703 + $0x18] sm:$0xff] %vm349, %v658
        %708 = vst.msk [vmem:[%s703 + $0x20] sm:$0xff] %vm349, %v659
        %709 = vst.msk [vmem:[%s703 + $0x28] sm:$0xff] %vm349, %v660
        %710 = vst.msk [vmem:[%s703 + $0x30] sm:$0xff] %vm349, %v661
        %711 = vst.msk [vmem:[%s703 + $0x38] sm:$0xff] %vm349, %v662
        %712 = vst.msk [vmem:[%s703 + $0x40] sm:$0xff] %vm349, %v663
        %713 = vst.msk [vmem:[%s703 + $0x48] sm:$0xff] %vm349, %v664
        %714 = vst.msk [vmem:[%s703 + $0x50] sm:$0xff] %vm349, %v665
        %715 = vst.msk [vmem:[%s703 + $0x58] sm:$0xff] %vm349, %v666
        %716 = vst.msk [vmem:[%s703 + $0x60] sm:$0xff] %vm349, %v667
        %717 = vst.msk [vmem:[%s703 + $0x68] sm:$0xff] %vm349, %v668
        %718 = vst.msk [vmem:[%s703 + $0x70] sm:$0xff] %vm349, %v669
        %719 = vst.msk [vmem:[%s703 + $0x78] sm:$0xff] %vm349, %v670
        %720 = vst.msk [vmem:[%s703 + $0x80] sm:$0xff] %vm349, %v687
        %721 = vst.msk [vmem:[%s703 + $0x88] sm:$0xff] %vm349, %v688
        %722 = vst.msk [vmem:[%s703 + $0x90] sm:$0xff] %vm349, %v689
        %723 = vst.msk [vmem:[%s703 + $0x98] sm:$0xff] %vm349, %v690
        %724 = vst.msk [vmem:[%s703 + $0xa0] sm:$0xff] %vm349, %v691
        %725 = vst.msk [vmem:[%s703 + $0xa8] sm:$0xff] %vm349, %v692
        %726 = vst.msk [vmem:[%s703 + $0xb0] sm:$0xff] %vm349, %v693
        %727 = vst.msk [vmem:[%s703 + $0xb8] sm:$0xff] %vm349, %v694
        %728 = vst.msk [vmem:[%s703 + $0xc0] sm:$0xff] %vm349, %v695
        %729 = vst.msk [vmem:[%s703 + $0xc8] sm:$0xff] %vm349, %v696
        %730 = vst.msk [vmem:[%s703 + $0xd0] sm:$0xff] %vm349, %v697
        %731 = vst.msk [vmem:[%s703 + $0xd8] sm:$0xff] %vm349, %v698
        %732 = vst.msk [vmem:[%s703 + $0xe0] sm:$0xff] %vm349, %v699
        %733 = vst.msk [vmem:[%s703 + $0xe8] sm:$0xff] %vm349, %v700
        %734 = vst.msk [vmem:[%s703 + $0xf0] sm:$0xff] %vm349, %v701
        %735 = vst.msk [vmem:[%s703 + $0xf8] sm:$0xff] %vm349, %v702
        %p736 = scmp.lt.s32.totalorder %s15, 1
        %s737 = scalar_select %p736, %s15, 1
        %s738 = smul.addr %s737, 96
        %s739 = smul.addr %s738, 8
        %s740 = scalar_lea.vmem %s3, %s739
        // Predicated region
        $region37: #{tpu_custom_call.1} parent=31 // pred_check
          %p741 = pneg %p101
        $region38: #{tpu_custom_call.1} parent=31 // pred_check_branch
          %743 = sbr.rel (%p741) target = $region40
        $region39: #{tpu_custom_call.1} parent=31 // pred_region
          _
        $region40: #{tpu_custom_call.1} parent=31 // pred_fallthru
          _
      $region32: #{tpu_custom_call.1} parent=5 // pred_fallthru
        _
      %p744 = scmp.le.s32.totalorder 2, %s10
      // Predicated region
      $region41: #{tpu_custom_call.1} parent=5 // pred_check
        %p745 = pneg %p744
      $region42: #{tpu_custom_call.1} parent=5 // pred_check_branch
        %747 = sbr.rel (%p745) target = $region44
      $region43: #{tpu_custom_call.1} parent=5 // pred_region
        %s748 = ssub.s32 %s10, 2
        // Predicated region
        $region45: #{tpu_custom_call.1} parent=43 // pred_check
          %p749 = pneg %p107
        $region46: #{tpu_custom_call.1} parent=43 // pred_check_branch
          %751 = sbr.rel (%p749) target = $region48
        $region47: #{tpu_custom_call.1} parent=43 // pred_region
          %p752 = scmp.lt.s32.totalorder %s16, 1
          %s753 = scalar_select %p752, %s16, 1
          %s754 = smul.addr %s753, 96
          %s755 = smul.addr %s754, 8
          %s756 = scalar_lea.vmem %s3, %s755
        $region48: #{tpu_custom_call.1} parent=43 // pred_fallthru
          _
      $region44: #{tpu_custom_call.1} parent=5 // pred_fallthru
        _
    $region6: #{tpu_custom_call.1} parent=1 // loop_footer
      %s14 = sadd.s32 1, %s10
    $region7: #{tpu_custom_call.1} parent=1 // loop_footer_branch
      %9 = sbr.rel target = $region3
    $region8: #{tpu_custom_call.1} parent=1 // loop_exit
      _
    %757 = vsyncpa [#allocation4], 1
    %s758 = scalar_lea.sflag [#allocation4], 1
    %759 = vsyncpa %s758, 1

// kernel: tpu_custom_call.1
$region0: #{tpu_custom_call.1}
  #allocation0 [shape = 'u32[]', space=smem, size = 0x4, offset = 0x4, fixed_abs, tag = 'smem constant byte address 0x4 - core index']
  #allocation1 [shape = 'u32[144,128]{1,0:T(1,128)}', space=vmem, size = 0x12000, scoped, tag = 'internal scratch']
  #allocation2 [shape = 'f32[8,256]{1,0:T(8,128)}', space=vmem, size = 0x2000, scoped, tag = 'scratch operand']
  %s0 = inlined_call_operand.vmem [shape: f32[3,2], index: 0, kind: input, shape index: {}]
  %s1 = inlined_call_operand.vmem [shape: f32[2,256], index: 1, kind: input, shape index: {}]
  %s2 = inlined_call_operand.vmem [shape: f32[2,3,7,256], index: 2, kind: input, shape index: {}]
  %s3 = inlined_call_operand.vmem [shape: f32[2,3,7,256], index: 3, kind: output, shape index: {}]
  %s4 = sld [smem:[#allocation0]]
  $region49: #{tpu_custom_call.1} parent=0
    _
  %s6 = ssub.s32 1, %s4
  %s7 = scalar_select 0, %s6, %s4
  $region1: #{tpu_custom_call.1} parent=0
    #allocation3 [shape = 'u8[2048]{0}', space=smem, size = 0x800, scoped, tag = 'input window, operand 0, single buffered']
    #allocation4 [shape = 's32[2]{0}', space=sflag, size = 0x8, scoped, tag = 'scoped memory for tpu_custom_call.1']
    %8 = vsyncpa [#allocation4], 0
    loop: start=0, step=1, limit=4
    $region2: #{tpu_custom_call.1} parent=1 // loop_pre_header
      _
    $region3: #{tpu_custom_call.1} parent=1 // loop_header
      %s10 = sphi 0, %s14
      %p11 = scmp.ge.s32.totalorder %s10, 4
      %s18 = sphi 0, %s18
      %s20 = sphi 0, %s18
      %s21 = sphi 0, %s20
      %s35 = sphi 0, %s21
      %s39 = sphi 0, %s39
      %s41 = sphi 0, %s39
      %s42 = sphi 0, %s41
      %s56 = sphi 0, %s42
      %s62 = sphi 0, %s64
      %s65 = sphi 0, %s62
      %s66 = sphi 0, %s65
      %s82 = sphi 0, %s66
      %s88 = sphi 0, %s90
      %s91 = sphi 0, %s88
      %s92 = sphi 0, %s91
      %s108 = sphi 0, %s92
    $region4: #{tpu_custom_call.1} parent=1 // loop_header_branch
      %13 = sbr.rel (%p11) target = $region8
    $region5: #{tpu_custom_call.1} parent=1 // loop_body
      %s15 = ssub.s32 %s10, 1
      %s16 = ssub.s32 %s10, 2
      %s17 = sadd.s32 %s10, 1
      %s19 = sadd.s32 %s18, 1
      %p22 = scmp.eq.s32.totalorder %s10, 1
      %p23 = scmp.ne.s32.totalorder %s18, %s20
      %p24 = scmp.eq.s32.totalorder %s10, 0
      %p25 = por %p23, %p24
      %p26 = scmp.ne.s32.totalorder %s18, %s20
      %p27 = scmp.eq.s32.totalorder %s15, 1
      %p28 = por %p26, %p27
      %p29 = scmp.ne.s32.totalorder %s20, %s21
      %p30 = scmp.eq.s32.totalorder %s15, 0
      %p31 = por %p29, %p30
      %p32 = scmp.ne.s32.totalorder %s20, %s21
      %p33 = scmp.eq.s32.totalorder %s16, 1
      %p34 = por %p32, %p33
      %p36 = scmp.ne.s32.totalorder %s21, %s35
      %p37 = scmp.eq.s32.totalorder %s16, 0
      %p38 = por %p36, %p37
      %s40 = sadd.s32 %s39, 1
      %p43 = scmp.eq.s32.totalorder %s10, 1
      %p44 = scmp.ne.s32.totalorder %s39, %s41
      %p45 = scmp.eq.s32.totalorder %s10, 0
      %p46 = por %p44, %p45
      %p47 = scmp.ne.s32.totalorder %s39, %s41
      %p48 = scmp.eq.s32.totalorder %s15, 1
      %p49 = por %p47, %p48
      %p50 = scmp.ne.s32.totalorder %s41, %s42
      %p51 = scmp.eq.s32.totalorder %s15, 0
      %p52 = por %p50, %p51
      %p53 = scmp.ne.s32.totalorder %s41, %s42
      %p54 = scmp.eq.s32.totalorder %s16, 1
      %p55 = por %p53, %p54
      %p57 = scmp.ne.s32.totalorder %s42, %s56
      %p58 = scmp.eq.s32.totalorder %s16, 0
      %p59 = por %p57, %p58
      %s60 = ssub.s32 %s10, %s17
      %p61 = scmp.eq.s32.totalorder %s60, 0
      %s63 = sadd.s32 %s62, 1
      %s64 = scalar_select %p61, %s62, %s63
      %p67 = pneg %p61
      %p68 = scmp.eq.s32.totalorder %s10, 1
      %p69 = por %p67, %p68
      %p70 = scmp.ne.s32.totalorder %s62, %s65
      %p71 = scmp.eq.s32.totalorder %s10, 0
      %p72 = por %p70, %p71
      %p73 = scmp.ne.s32.totalorder %s62, %s65
      %p74 = scmp.eq.s32.totalorder %s15, 1
      %p75 = por %p73, %p74
      %p76 = scmp.ne.s32.totalorder %s65, %s66
      %p77 = scmp.eq.s32.totalorder %s15, 0
      %p78 = por %p76, %p77
      %p79 = scmp.ne.s32.totalorder %s65, %s66
      %p80 = scmp.eq.s32.totalorder %s16, 1
      %p81 = por %p79, %p80
      %p83 = scmp.ne.s32.totalorder %s66, %s82
      %p84 = scmp.eq.s32.totalorder %s16, 0
      %p85 = por %p83, %p84
      %s86 = ssub.s32 %s10, %s17
      %p87 = scmp.eq.s32.totalorder %s86, 0
      %s89 = sadd.s32 %s88, 1
      %s90 = scalar_select %p87, %s88, %s89
      %p93 = pneg %p87
      %p94 = scmp.eq.s32.totalorder %s10, 1
      %p95 = por %p93, %p94
      %p96 = scmp.ne.s32.totalorder %s88, %s91
      %p97 = scmp.eq.s32.totalorder %s10, 0
      %p98 = por %p96, %p97
      %p99 = scmp.ne.s32.totalorder %s88, %s91
      %p100 = scmp.eq.s32.totalorder %s15, 1
      %p101 = por %p99, %p100
      %p102 = scmp.ne.s32.totalorder %s91, %s92
      %p103 = scmp.eq.s32.totalorder %s15, 0
      %p104 = por %p102, %p103
      %p105 = scmp.ne.s32.totalorder %s91, %s92
      %p106 = scmp.eq.s32.totalorder %s16, 1
      %p107 = por %p105, %p106
      %p109 = scmp.ne.s32.totalorder %s92, %s108
      %p110 = scmp.eq.s32.totalorder %s16, 0
      %p111 = por %p109, %p110
      %p112 = scmp.le.s32.totalorder 1, %s10
      %p113 = scmp.lt.s32.totalorder %s10, 3
      %p114 = pnand %p112, %p113
      %p115 = pneg %p114
      // Predicated region
      $region9: #{tpu_custom_call.1} parent=5 // pred_check
        _
      $region10: #{tpu_custom_call.1} parent=5 // pred_check_branch
        %117 = sbr.rel (%p114) target = $region12
      $region11: #{tpu_custom_call.1} parent=5 // pred_region
        %s118 = ssub.s32 %s10, 1
        // Predicated region
        $region13: #{tpu_custom_call.1} parent=11 // pred_check
          %p119 = pneg %p31
        $region14: #{tpu_custom_call.1} parent=11 // pred_check_branch
          %121 = sbr.rel (%p119) target = $region16
        $region15: #{tpu_custom_call.1} parent=11 // pred_region
          %s123 = ssub.s32 64, 64
          %124 = vsyncadd [#allocation4], %s123
          %s126 = sshll.u32 %s0, 4
          %s127 = int_to_ptr.vmem [resolvable:$true] %s126
          %129 = dma.vmem_to_smem %s127, 64, [#allocation3], [#allocation4]
        $region16: #{tpu_custom_call.1} parent=11 // pred_fallthru
          _
        // Predicated region
        $region17: #{tpu_custom_call.1} parent=11 // pred_check
          %p130 = pneg %p52
        $region18: #{tpu_custom_call.1} parent=11 // pred_check_branch
          %132 = sbr.rel (%p130) target = $region20
        $region19: #{tpu_custom_call.1} parent=11 // pred_region
          _
        $region20: #{tpu_custom_call.1} parent=11 // pred_fallthru
          _
      $region12: #{tpu_custom_call.1} parent=5 // pred_fallthru
        _
      %p133 = scmp.lt.s32.totalorder %s10, 2
      // Predicated region
      $region21: #{tpu_custom_call.1} parent=5 // pred_check
        %p134 = pneg %p133
      $region22: #{tpu_custom_call.1} parent=5 // pred_check_branch
        %136 = sbr.rel (%p134) target = $region24
      $region23: #{tpu_custom_call.1} parent=5 // pred_region
        // Predicated region
        $region25: #{tpu_custom_call.1} parent=23 // pred_check
          %p137 = pneg %p72
        $region26: #{tpu_custom_call.1} parent=23 // pred_check_branch
          %139 = sbr.rel (%p137) target = $region28
        $region27: #{tpu_custom_call.1} parent=23 // pred_region
          %p140 = scmp.lt.s32.totalorder %s10, 1
          %s141 = scalar_select %p140, %s10, 1
          %s142 = smul.addr %s141, 6
          %s143 = smul.addr %s142, 8
          %s144 = scalar_lea.vmem %s2, %s143
        $region28: #{tpu_custom_call.1} parent=23 // pred_fallthru
          _
      $region24: #{tpu_custom_call.1} parent=5 // pred_fallthru
        _
      %p145 = scmp.le.s32.totalorder 1, %s10
      %p146 = scmp.lt.s32.totalorder %s10, 3
      %p147 = pnand %p145, %p146
      %p148 = pneg %p147
      // Predicated region
      $region29: #{tpu_custom_call.1} parent=5 // pred_check
        _
      $region30: #{tpu_custom_call.1} parent=5 // pred_check_branch
        %150 = sbr.rel (%p147) target = $region32
      $region31: #{tpu_custom_call.1} parent=5 // pred_region
        %s151 = ssub.s32 %s10, 1
        // Predicated region
        $region33: #{tpu_custom_call.1} parent=31 // pred_check
          %p152 = pneg %p31
        $region34: #{tpu_custom_call.1} parent=31 // pred_check_branch
          %154 = sbr.rel (%p152) target = $region36
        $region35: #{tpu_custom_call.1} parent=31 // pred_region
          %155 = dma.done [#allocation4], 64
        $region36: #{tpu_custom_call.1} parent=31 // pred_fallthru
          _
        %156 = sfence
        %p157 = pneg %p31
        %p158 = pneg %p28
        %p159 = pneg %p52
        %p160 = pneg %p49
        %p161 = scmp.lt.s32.totalorder %s15, 1
        %s162 = scalar_select %p161, %s15, 1
        %s163 = smul.addr %s162, 6
        %s164 = smul.addr %s163, 8
        %s165 = scalar_lea.vmem %s2, %s164
        %p166 = pneg %p78
        %p167 = pneg %p75
        %p168 = pneg %p104
        %p169 = pneg %p101
        %p170 = scmp.lt.s32.totalorder %s15, 1
        %s171 = scalar_select %p170, %s15, 1
        %s172 = smul.addr %s171, 6
        %s173 = smul.addr %s172, 8
        %s174 = scalar_lea.vmem %s3, %s173
        %p175 = scmp.lt.s32.totalorder %s15, 1
        %s176 = scalar_select %p175, %s15, 1
        %s177 = smul.addr %s176, 6
        %s178 = smul.addr %s177, 8
        %s179 = scalar_lea.vmem %s2, %s178
        %p180 = scmp.lt.s32.totalorder %s15, 1
        %s181 = scalar_select %p180, %s15, 1
        %s182 = smul.addr %s181, 6
        %s183 = smul.addr %s182, 8
        %s184 = scalar_lea.vmem %s3, %s183
        %v185 = vld [vmem:[%s1] sm:$0xf]
        %v186 = vlaneseq
        %vm187 = vcmp.ge.s32.totalorder %v186, 0
        %vm188 = vcmp.lt.s32.totalorder %v186, 256
        %vm189 = vmand %vm187, %vm188
        %s190 = scalar_lea.vmem [#allocation2], 7
        %191 = vst.msk [vmem:[%s190] ss:$8 sm:$0x3] %vm189, 0.0
        %192 = vst.msk [vmem:[%s190] ss:$8 sm:$0x0] %vm189, 0.0
        %v193 = vld [vmem:[%s179] sm:$0x7f]
        %v194 = vld [vmem:[%s179 + $0x8] sm:$0x7f]
        %v195 = vxor.u32 %v193, 2147483648
        %v196 = vxor.u32 %v194, 2147483648
        %v197 = vmul.f32 %v195, 1.442695
        %v198 = vpow.pop %v197
        %v199 = vmul.f32 %v196, 1.442695
        %v200 = vpow.pop %v199
        %v201 = vadd.f32 %v198, 1.0
        %v202 = vadd.f32 %v200, 1.0
        %v203 = vrcp.pop %v201
        %v204 = vmul.f32 1.0, %v203
        %v205 = vrcp.pop %v202
        %v206 = vmul.f32 1.0, %v205
        %v209 = vunpack.c.l.s4 1983009808
        %v210 = vunpack.c.0.s8 %v209
        %v211 = vlaneseq
        %v212 = vshrl.u32 %v211, 7
        %v213 = vsub.s32 %v210, %v212
        %v214 = vrot.slane %v185, %v213
        %v215 = vcombine.high %v214, %v214
        %v218 = vadd.f32 %v204, %v214
        %v219 = vadd.f32 %v206, %v215
        %v220 = vmul.f32 %v218, 4.0
        %v221 = vmul.f32 %v219, 4.0
        %222 = vst [vmem:[#allocation2] sm:$0x3] %v220
        %223 = vst [vmem:[#allocation2 + $0x8] sm:$0x3] %v221
        %v224 = vmul.f32 %v193, 1.442695
        %v225 = vpow.pop %v224
        %v226 = vmul.f32 %v194, 1.442695
        %v227 = vpow.pop %v226
        %s228 = sld [smem:[#allocation3]]
        %v229 = vstv %s228
        %v230 = vmul.f32 %v225, %v229
        %v231 = vmul.f32 %v227, %v229
        %v234 = vcombine.low %v230, %v231
        %v236 = vunpack.c.l.s4 1966171168
        %v237 = vunpack.c.0.s8 %v236
        %v238 = vlaneseq
        %v239 = vshrl.u32 %v238, 7
        %v240 = vsub.s32 %v237, %v239
        %v241 = vrot.slane %v234, %v240
        %v243 = vunpack.c.l.s4 1966171168
        %v244 = vunpack.c.0.s8 %v243
        %v245 = vlaneseq
        %v246 = vshrl.u32 %v245, 7
        %v247 = vsub.s32 %v244, %v246
        %v248 = vrot.slane %v241, %v247
        %v249 = vcombine.high %v248, %v248
        %s251 = scalar_lea.vmem [#allocation2], 2
        %252 = vst.msk [vmem:[%s251] ss:$8 sm:$0x3] %vm189, %v249
        %253 = vst.msk [vmem:[%s251] ss:$8 sm:$0x0] %vm189, %v249
        %s254 = sld [smem:[#allocation3 + $0x1]]
        %v255 = vstv %s254
        %v256 = vmul.f32 %v225, %v255
        %v257 = vmul.f32 %v227, %v255
        %v260 = vcombine.low %v256, %v257
        %v262 = vunpack.c.l.s4 1966171168
        %v263 = vunpack.c.0.s8 %v262
        %v264 = vlaneseq
        %v265 = vshrl.u32 %v264, 7
        %v266 = vsub.s32 %v263, %v265
        %v267 = vrot.slane %v260, %v266
        %v268 = vcombine.high %v267, %v267
        %v270 = vunpack.c.l.s4 1966171168
        %v271 = vunpack.c.0.s8 %v270
        %v272 = vlaneseq
        %v273 = vshrl.u32 %v272, 7
        %v274 = vsub.s32 %v271, %v273
        %v275 = vrot.slane %v268, %v274
        %v276 = vcombine.high %v275, %v275
        %s278 = scalar_lea.vmem [#allocation2], 3
        %279 = vst.msk [vmem:[%s278] ss:$8 sm:$0x3] %vm189, %v276
        %280 = vst.msk [vmem:[%s278] ss:$8 sm:$0x0] %vm189, %v276
        %281 = vst [vmem:[#allocation2] sm:$0x70] %v204
        %282 = vst [vmem:[#allocation2 + $0x8] sm:$0x70] %v206
        %v283 = vld [vmem:[#allocation2] sm:$0x7f]
        %v284 = vld [vmem:[#allocation2 + $0x8] sm:$0x7f]
        %285 = vst [vmem:[%s184] sm:$0x7f] %v283
        %286 = vst [vmem:[%s184 + $0x8] sm:$0x7f] %v284
        %s287 = scalar_lea.vmem %s179, 16
        %v288 = vld [vmem:[%s287] sm:$0x7f]
        %v289 = vld [vmem:[%s287 + $0x8] sm:$0x7f]
        %v290 = vxor.u32 %v288, 2147483648
        %v291 = vxor.u32 %v289, 2147483648
        %v292 = vmul.f32 %v290, 1.442695
        %v293 = vpow.pop %v292
        %v294 = vmul.f32 %v291, 1.442695
        %v295 = vpow.pop %v294
        %v296 = vadd.f32 %v293, 1.0
        %v297 = vadd.f32 %v295, 1.0
        %v298 = vrcp.pop %v296
        %v299 = vmul.f32 1.0, %v298
        %v300 = vrcp.pop %v297
        %v301 = vmul.f32 1.0, %v300
        %v302 = vadd.f32 %v299, %v214
        %v303 = vadd.f32 %v301, %v215
        %v304 = vmul.f32 %v302, 4.0
        %v305 = vmul.f32 %v303, 4.0
        %306 = vst [vmem:[#allocation2] sm:$0x3] %v304
        %307 = vst [vmem:[#allocation2 + $0x8] sm:$0x3] %v305
        %v308 = vmul.f32 %v288, 1.442695
        %v309 = vpow.pop %v308
        %v310 = vmul.f32 %v289, 1.442695
        %v311 = vpow.pop %v310
        %s312 = sld [smem:[#allocation3 + $0x80]]
        %v313 = vstv %s312
        %v314 = vmul.f32 %v309, %v313
        %v315 = vmul.f32 %v311, %v313
        %v318 = vcombine.low %v314, %v315
        %v320 = vunpack.c.l.s4 1966171168
        %v321 = vunpack.c.0.s8 %v320
        %v322 = vlaneseq
        %v323 = vshrl.u32 %v322, 7
        %v324 = vsub.s32 %v321, %v323
        %v325 = vrot.slane %v318, %v324
        %v327 = vunpack.c.l.s4 1966171168
        %v328 = vunpack.c.0.s8 %v327
        %v329 = vlaneseq
        %v330 = vshrl.u32 %v329, 7
        %v331 = vsub.s32 %v328, %v330
        %v332 = vrot.slane %v325, %v331
        %v333 = vcombine.high %v332, %v332
        %335 = vst.msk [vmem:[%s251] ss:$8 sm:$0x3] %vm189, %v333
        %336 = vst.msk [vmem:[%s251] ss:$8 sm:$0x0] %vm189, %v333
        %s337 = sld [smem:[#allocation3 + $0x81]]
        %v338 = vstv %s337
        %v339 = vmul.f32 %v309, %v338
        %v340 = vmul.f32 %v311, %v338
        %v343 = vcombine.low %v339, %v340
        %v345 = vunpack.c.l.s4 1966171168
        %v346 = vunpack.c.0.s8 %v345
        %v347 = vlaneseq
        %v348 = vshrl.u32 %v347, 7
        %v349 = vsub.s32 %v346, %v348
        %v350 = vrot.slane %v343, %v349
        %v351 = vcombine.high %v350, %v350
        %v353 = vunpack.c.l.s4 1966171168
        %v354 = vunpack.c.0.s8 %v353
        %v355 = vlaneseq
        %v356 = vshrl.u32 %v355, 7
        %v357 = vsub.s32 %v354, %v356
        %v358 = vrot.slane %v351, %v357
        %v359 = vcombine.high %v358, %v358
        %361 = vst.msk [vmem:[%s278] ss:$8 sm:$0x3] %vm189, %v359
        %362 = vst.msk [vmem:[%s278] ss:$8 sm:$0x0] %vm189, %v359
        %363 = vst [vmem:[#allocation2] sm:$0x70] %v299
        %364 = vst [vmem:[#allocation2 + $0x8] sm:$0x70] %v301
        %v365 = vld [vmem:[#allocation2] sm:$0x7f]
        %v366 = vld [vmem:[#allocation2 + $0x8] sm:$0x7f]
        %s367 = scalar_lea.vmem %s184, 16
        %368 = vst [vmem:[%s367] sm:$0x7f] %v365
        %369 = vst [vmem:[%s367 + $0x8] sm:$0x7f] %v366
        %s370 = scalar_lea.vmem %s179, 32
        %v371 = vld [vmem:[%s370] sm:$0x7f]
        %v372 = vld [vmem:[%s370 + $0x8] sm:$0x7f]
        %v373 = vxor.u32 %v371, 2147483648
        %v374 = vxor.u32 %v372, 2147483648
        %v375 = vmul.f32 %v373, 1.442695
        %v376 = vpow.pop %v375
        %v377 = vmul.f32 %v374, 1.442695
        %v378 = vpow.pop %v377
        %v379 = vadd.f32 %v376, 1.0
        %v380 = vadd.f32 %v378, 1.0
        %v381 = vrcp.pop %v379
        %v382 = vmul.f32 1.0, %v381
        %v383 = vrcp.pop %v380
        %v384 = vmul.f32 1.0, %v383
        %v385 = vadd.f32 %v382, %v214
        %v386 = vadd.f32 %v384, %v215
        %v387 = vmul.f32 %v385, 4.0
        %v388 = vmul.f32 %v386, 4.0
        %389 = vst [vmem:[#allocation2] sm:$0x3] %v387
        %390 = vst [vmem:[#allocation2 + $0x8] sm:$0x3] %v388
        %v391 = vmul.f32 %v371, 1.442695
        %v392 = vpow.pop %v391
        %v393 = vmul.f32 %v372, 1.442695
        %v394 = vpow.pop %v393
        %s395 = sld [smem:[#allocation3 + $0x100]]
        %v396 = vstv %s395
        %v397 = vmul.f32 %v392, %v396
        %v398 = vmul.f32 %v394, %v396
        %v401 = vcombine.low %v397, %v398
        %v403 = vunpack.c.l.s4 1966171168
        %v404 = vunpack.c.0.s8 %v403
        %v405 = vlaneseq
        %v406 = vshrl.u32 %v405, 7
        %v407 = vsub.s32 %v404, %v406
        %v408 = vrot.slane %v401, %v407
        %v410 = vunpack.c.l.s4 1966171168
        %v411 = vunpack.c.0.s8 %v410
        %v412 = vlaneseq
        %v413 = vshrl.u32 %v412, 7
        %v414 = vsub.s32 %v411, %v413
        %v415 = vrot.slane %v408, %v414
        %v416 = vcombine.high %v415, %v415
        %418 = vst.msk [vmem:[%s251] ss:$8 sm:$0x3] %vm189, %v416
        %419 = vst.msk [vmem:[%s251] ss:$8 sm:$0x0] %vm189, %v416
        %s420 = sld [smem:[#allocation3 + $0x101]]
        %v421 = vstv %s420
        %v422 = vmul.f32 %v392, %v421
        %v423 = vmul.f32 %v394, %v421
        %v426 = vcombine.low %v422, %v423
        %v428 = vunpack.c.l.s4 1966171168
        %v429 = vunpack.c.0.s8 %v428
        %v430 = vlaneseq
        %v431 = vshrl.u32 %v430, 7
        %v432 = vsub.s32 %v429, %v431
        %v433 = vrot.slane %v426, %v432
        %v434 = vcombine.high %v433, %v433
        %v436 = vunpack.c.l.s4 1966171168
        %v437 = vunpack.c.0.s8 %v436
        %v438 = vlaneseq
        %v439 = vshrl.u32 %v438, 7
        %v440 = vsub.s32 %v437, %v439
        %v441 = vrot.slane %v434, %v440
        %v442 = vcombine.high %v441, %v441
        %444 = vst.msk [vmem:[%s278] ss:$8 sm:$0x3] %vm189, %v442
        %445 = vst.msk [vmem:[%s278] ss:$8 sm:$0x0] %vm189, %v442
        %446 = vst [vmem:[#allocation2] sm:$0x70] %v382
        %447 = vst [vmem:[#allocation2 + $0x8] sm:$0x70] %v384
        %v448 = vld [vmem:[#allocation2] sm:$0x7f]
        %v449 = vld [vmem:[#allocation2 + $0x8] sm:$0x7f]
        %s450 = scalar_lea.vmem %s184, 32
        %451 = vst [vmem:[%s450] sm:$0x7f] %v448
        %452 = vst [vmem:[%s450 + $0x8] sm:$0x7f] %v449
        %p453 = scmp.lt.s32.totalorder %s15, 1
        %s454 = scalar_select %p453, %s15, 1
        %s455 = smul.addr %s454, 6
        %s456 = smul.addr %s455, 8
        %s457 = scalar_lea.vmem %s3, %s456
        // Predicated region
        $region37: #{tpu_custom_call.1} parent=31 // pred_check
          %p458 = pneg %p101
        $region38: #{tpu_custom_call.1} parent=31 // pred_check_branch
          %460 = sbr.rel (%p458) target = $region40
        $region39: #{tpu_custom_call.1} parent=31 // pred_region
          _
        $region40: #{tpu_custom_call.1} parent=31 // pred_fallthru
          _
      $region32: #{tpu_custom_call.1} parent=5 // pred_fallthru
        _
      %p461 = scmp.le.s32.totalorder 2, %s10
      // Predicated region
      $region41: #{tpu_custom_call.1} parent=5 // pred_check
        %p462 = pneg %p461
      $region42: #{tpu_custom_call.1} parent=5 // pred_check_branch
        %464 = sbr.rel (%p462) target = $region44
      $region43: #{tpu_custom_call.1} parent=5 // pred_region
        %s465 = ssub.s32 %s10, 2
        // Predicated region
        $region45: #{tpu_custom_call.1} parent=43 // pred_check
          %p466 = pneg %p107
        $region46: #{tpu_custom_call.1} parent=43 // pred_check_branch
          %468 = sbr.rel (%p466) target = $region48
        $region47: #{tpu_custom_call.1} parent=43 // pred_region
          %p469 = scmp.lt.s32.totalorder %s16, 1
          %s470 = scalar_select %p469, %s16, 1
          %s471 = smul.addr %s470, 6
          %s472 = smul.addr %s471, 8
          %s473 = scalar_lea.vmem %s3, %s472
        $region48: #{tpu_custom_call.1} parent=43 // pred_fallthru
          _
      $region44: #{tpu_custom_call.1} parent=5 // pred_fallthru
        _
    $region6: #{tpu_custom_call.1} parent=1 // loop_footer
      %s14 = sadd.s32 1, %s10
    $region7: #{tpu_custom_call.1} parent=1 // loop_footer_branch
      %9 = sbr.rel target = $region3
    $region8: #{tpu_custom_call.1} parent=1 // loop_exit
      _
    %474 = vsyncpa [#allocation4], 1
    %s475 = scalar_lea.sflag [#allocation4], 1
    %476 = vsyncpa %s475, 1

</llo_original>
